<compile_context>
chip_gen: v6e
topology: v6e:2x2x1
jax: 0.10.0
libtpu: 0.0.40
codegen_flags: <defaults>
</compile_context>

<pallas_src>
import functools

import jax
import jax.numpy as jnp
from jax.experimental import pallas as pl
from jax.experimental.pallas import tpu as pltpu


def _round_up(n, m):
    return ((n + m - 1) // m) * m


# -----------------------------------------------------------------------------
# In-kernel 3x3 conv as 3 accumulating banded matmuls (lane-dense output,
# no reshapes / relayouts).
#   src_ref: (H+2, L_in) padded rows (row r = image row r-1; rows 0, H+1 zero)
#   w_ref:   (3, L_in, W*Cout) bf16 banded weights
#   returns: (H, W*Cout) f32
# -----------------------------------------------------------------------------
def _conv3x3_banded(src_ref, w_ref, H):
    def tap(kh):
        slab = src_ref[pl.ds(kh, H), :].astype(jnp.bfloat16)
        return jnp.dot(slab, w_ref[kh], preferred_element_type=jnp.float32)
    return tap(0) + tap(1) + tap(2)


def _rowsum_stats(acc):
    # Lane-dense partial BN stats: row 0 = sum, row 1 = sum of squares.
    return jnp.concatenate([jnp.sum(acc, axis=0, keepdims=True),
                            jnp.sum(acc * acc, axis=0, keepdims=True)], axis=0)


# -----------------------------------------------------------------------------
# Kernel 1: conv1 batch statistics only (conv1 itself never hits HBM).
# -----------------------------------------------------------------------------
def _conv1_stats_kernel(xv_ref, w1_ref, stats_ref, *, H):
    acc = _conv3x3_banded(xv_ref, w1_ref, H)          # (H, W*C1) f32
    stats_ref[...] = _rowsum_stats(acc)


# -----------------------------------------------------------------------------
# Kernel 2: recompute conv1 -> fused BN1-affine + ReLU -> conv2 + stats2.
# -----------------------------------------------------------------------------
def _stage2_kernel(xv_ref, w1_ref, sc1_ref, sh1_ref, w2_ref,
                   conv2_ref, stats2_ref, act_ref, *, H):
    acc1 = _conv3x3_banded(xv_ref, w1_ref, H)                      # (H, W*C1) f32
    y1 = jnp.maximum(acc1 * sc1_ref[...] + sh1_ref[...], 0.0)
    act_ref[...] = jnp.zeros_like(act_ref)                         # zero border rows
    act_ref[1:H + 1, :] = y1                                       # full-lane-width store
    acc2 = _conv3x3_banded(act_ref, w2_ref, H)                     # (H, W*C2) f32
    conv2_ref[...] = acc2
    stats2_ref[...] = _rowsum_stats(acc2)


# -----------------------------------------------------------------------------
# Host-side helpers (tiny arrays)
# -----------------------------------------------------------------------------
def _banded_weight(w_oihw, W, l_in=None):
    """(Cout, Cin, 3, 3) -> (3, l_in, W*Cout) bf16 banded matmul weights.

    Entry [kh, win*Cin+ci, wout*Cout+co] = w[co, ci, kh, win - wout + 1] when
    win - wout in {-1, 0, 1}, else 0.  The horizontal taps AND the width-wise
    zero padding are folded into the band structure."""
    c_out, c_in = w_oihw.shape[0], w_oihw.shape[1]
    taps = jnp.transpose(w_oihw, (2, 3, 1, 0))                     # (3, 3, Cin, Cout)
    kw = jnp.arange(W)[:, None] - jnp.arange(W)[None, :] + 1       # [win, wout]
    valid = (kw >= 0) & (kw <= 2)
    band = taps[:, jnp.clip(kw, 0, 2)]                             # (3, W, W, Cin, Cout)
    band = band * valid[None, :, :, None, None].astype(band.dtype)
    band = jnp.transpose(band, (0, 1, 3, 2, 4)).reshape(3, W * c_in, W * c_out)
    if l_in is not None and l_in > W * c_in:
        band = jnp.pad(band, ((0, 0), (0, l_in - W * c_in), (0, 0)))
    return band.astype(jnp.bfloat16)


def _scale_shift(stats, gamma, beta, count, W, C, eps=1e-5):
    """stats: (B, 2, W*C) lane-dense [sum, sumsq] partials -> fused BN scale/shift."""
    s = jnp.sum(stats, axis=0).reshape(2, W, C).sum(axis=1)        # (2, C)
    mean = s[0] / count
    var = s[1] / count - mean * mean                               # biased variance
    scale = gamma * jax.lax.rsqrt(var + eps)
    shift = beta - mean * scale
    return scale, shift


def _tile_chan(v, W):
    """Per-channel (C,) -> per-lane (1, W*C) for the lane-dense layout."""
    return jnp.tile(v, (W,)).reshape(1, -1)


def double_conv_forward(x_nchw, params):
    """Matches double_conv.forward (PyTorch NCHW in / NCHW out, BN in training mode)."""
    B, Cin, H, W = x_nchw.shape
    C1 = params["w1"].shape[0]
    C2 = params["w2"].shape[0]
    Hp = H + 2
    Lin = _round_up(W * Cin, 128)          # lane-pad the input row so loads are full vregs
    L1 = W * C1                            # 128 at these sizes
    L2 = W * C2                            # 128 at these sizes
    count = B * H * W

    # NCHW -> lane-dense (B, H+2, Lin): one zero row above/below (vertical conv
    # padding); horizontal padding is folded into the banded weights.
    x = jnp.transpose(x_nchw, (0, 2, 3, 1)).reshape(B, H, W * Cin)
    xv = jnp.pad(x, ((0, 0), (1, 1), (0, Lin - W * Cin)))

    w1b = _banded_weight(params["w1"], W, Lin)      # (3, Lin, L1) bf16
    w2b = _banded_weight(params["w2"], W)           # (3, L1,  L2) bf16
    # conv biases b1/b2 intentionally unused: training-mode BN cancels them exactly.

    cparams = pltpu.CompilerParams(dimension_semantics=("parallel",))
    # TODO(synk): if B == 1 on v7x, split the row axis across the two TensorCores
    # (per-core partial stats + a small final reduce) instead of batch-parallel.

    # ---- pass 1: conv1 batch statistics only -------------------------------
    stats1 = pl.pallas_call(
        functools.partial(_conv1_stats_kernel, H=H),
        grid=(B,),
        in_specs=[
            pl.BlockSpec((None, Hp, Lin), lambda b: (b, 0, 0)),
            pl.BlockSpec((3, Lin, L1), lambda b: (0, 0, 0)),
        ],
        out_specs=pl.BlockSpec((None, 2, L1), lambda b: (b, 0, 0)),
        out_shape=jax.ShapeDtypeStruct((B, 2, L1), jnp.float32),
        compiler_params=cparams,
    )(xv, w1b)

    scale1, shift1 = _scale_shift(stats1, params["g1"], params["be1"], count, W, C1)
    scale1_t, shift1_t = _tile_chan(scale1, W), _tile_chan(shift1, W)

    # ---- pass 2: conv1 (recompute) -> BN1+ReLU1 -> conv2 + stats2 ----------
    conv2, stats2 = pl.pallas_call(
        functools.partial(_stage2_kernel, H=H),
        grid=(B,),
        in_specs=[
            pl.BlockSpec((None, Hp, Lin), lambda b: (b, 0, 0)),
            pl.BlockSpec((3, Lin, L1), lambda b: (0, 0, 0)),
            pl.BlockSpec((1, L1), lambda b: (0, 0)),
            pl.BlockSpec((1, L1), lambda b: (0, 0)),
            pl.BlockSpec((3, L1, L2), lambda b: (0, 0, 0)),
        ],
        out_specs=[
            pl.BlockSpec((None, H, L2), lambda b: (b, 0, 0)),
            pl.BlockSpec((None, 2, L2), lambda b: (b, 0, 0)),
        ],
        out_shape=[
            jax.ShapeDtypeStruct((B, H, L2), jnp.float32),
            jax.ShapeDtypeStruct((B, 2, L2), jnp.float32),
        ],
        scratch_shapes=[pltpu.VMEM((Hp, L1), jnp.float32)],
        compiler_params=cparams,
    )(xv, w1b, scale1_t, shift1_t, w2b)

    scale2, shift2 = _scale_shift(stats2, params["g2"], params["be2"], count, W, C2)
    scale2_t, shift2_t = _tile_chan(scale2, W), _tile_chan(shift2, W)

    # ---- epilogue: BN2 + ReLU2 as plain jnp so XLA fuses it with the final
    # NHWC -> NCHW layout change (no extra Pallas pass / HBM round trip) ------
    out = jnp.maximum(conv2 * scale2_t + shift2_t, 0.0).reshape(B, H, W, C2)
    return jnp.transpose(out, (0, 3, 1, 2))


# -----------------------------------------------------------------------------
# Pure-JAX f32 reference (faithful to the PyTorch module, incl. conv bias)
# -----------------------------------------------------------------------------
def _ref_stage(x_nchw, w, b, g, be):
    y = jax.lax.conv_general_dilated(
        x_nchw, w, window_strides=(1, 1), padding=((1, 1), (1, 1)),
        dimension_numbers=("NCHW", "OIHW", "NCHW"))
    y = y + b[None, :, None, None]
    mean = jnp.mean(y, axis=(0, 2, 3), keepdims=True)
    var = jnp.mean((y - mean) ** 2, axis=(0, 2, 3), keepdims=True)
    y = (y - mean) * jax.lax.rsqrt(var + 1e-5)
    y = y * g[None, :, None, None] + be[None, :, None, None]
    return jnp.maximum(y, 0.0)


def _ref_double_conv(x_nchw, p):
    y = _ref_stage(x_nchw, p["w1"], p["b1"], p["g1"], p["be1"])
    y = _ref_stage(y, p["w2"], p["b2"], p["g2"], p["be2"])
    return y


if __name__ == "__main__":
    B, in_ch, out_ch, H, W = 2, 4, 8, 16, 16

    key = jax.random.PRNGKey(0)
    ks = jax.random.split(key, 9)
    x = jax.random.normal(ks[0], (B, in_ch, H, W), dtype=jnp.float32)

    params = {
        "w1": 0.1 * jax.random.normal(ks[1], (out_ch, in_ch, 3, 3), jnp.float32),
        "b1": 0.01 * jax.random.normal(ks[2], (out_ch,), jnp.float32),
        "g1": 1.0 + 0.1 * jax.random.normal(ks[3], (out_ch,), jnp.float32),
        "be1": 0.01 * jax.random.normal(ks[4], (out_ch,), jnp.float32),
        "w2": 0.1 * jax.random.normal(ks[5], (out_ch, out_ch, 3, 3), jnp.float32),
        "b2": 0.01 * jax.random.normal(ks[6], (out_ch,), jnp.float32),
        "g2": 1.0 + 0.1 * jax.random.normal(ks[7], (out_ch,), jnp.float32),
        "be2": 0.01 * jax.random.normal(ks[8], (out_ch,), jnp.float32),
    }

    fwd = jax.jit(double_conv_forward)
    out = jax.block_until_ready(fwd(x, params))
    ref = jax.block_until_ready(_ref_double_conv(x, params))

    assert out.shape == (B, out_ch, H, W), out.shape
    # Tolerance sized for bf16 MXU inputs through two conv+BN stages; the f32
    # reference is exact.  Structural/indexing errors would be O(1).
    err = float(jnp.max(jnp.abs(out - ref)))
    assert jnp.allclose(out, ref, rtol=4e-2, atol=4e-2), err
    print("KERNEL_OK")
</pallas_src>

<mosaic_0001>
module attributes {stable_mosaic.version = 11 : i64} {
  func.func @_conv1_stats_kernel(%arg0: i32, %arg1: memref<1x18x128xf32, #tpu.memory_space<vmem>>, %arg2: memref<3x128x128xbf16, #tpu.memory_space<vmem>>, %arg3: memref<1x2x128xf32, #tpu.memory_space<vmem>>) attributes {dimension_semantics = [#tpu.dimension_semantics<parallel>], iteration_bounds = array<i64: 2>, scalar_prefetch = 0 : i64, scratch_operands = 0 : i64, tpu.core_type = #tpu.core_type<tc>, window_params = [{transform_indices = @transform_0, window_bounds = array<i64: 1, 18, 128>}, {pipeline_mode = #tpu.pipeline_mode<synchronous>, transform_indices = @transform_1, window_bounds = array<i64: 3, 128, 128>}, {transform_indices = @transform_2, window_bounds = array<i64: 1, 2, 128>}]} {
    %c0 = arith.constant 0 : index
    %c0_0 = arith.constant 0 : index
    %c0_1 = arith.constant 0 : index
    %0 = vector.load %arg1[%c0, %c0_0, %c0_1] : memref<1x18x128xf32, #tpu.memory_space<vmem>>, vector<1x16x128xf32>
    %1 = vector.shape_cast %0 : vector<1x16x128xf32> to vector<16x128xf32>
    %2 = arith.truncf %1 : vector<16x128xf32> to vector<16x128xbf16>
    %c0_2 = arith.constant 0 : index
    %c0_3 = arith.constant 0 : index
    %c0_4 = arith.constant 0 : index
    %3 = vector.load %arg2[%c0_2, %c0_3, %c0_4] : memref<3x128x128xbf16, #tpu.memory_space<vmem>>, vector<1x128x128xbf16>
    %4 = vector.shape_cast %3 : vector<1x128x128xbf16> to vector<128x128xbf16>
    %cst = arith.constant dense<0.000000e+00> : vector<16x128xf32>
    %5 = tpu.matmul %2, %4, %cst {dimension_numbers = #tpu.dot_dimension_numbers<[1], [0], [0], [1], [0, 0, 1, 1], [], []>} : vector<16x128xbf16>, vector<128x128xbf16>, vector<16x128xf32> -> vector<16x128xf32>
    %c0_5 = arith.constant 0 : index
    %c1 = arith.constant 1 : index
    %c0_6 = arith.constant 0 : index
    %6 = vector.load %arg1[%c0_5, %c1, %c0_6] : memref<1x18x128xf32, #tpu.memory_space<vmem>>, vector<1x16x128xf32>
    %7 = vector.shape_cast %6 : vector<1x16x128xf32> to vector<16x128xf32>
    %8 = arith.truncf %7 : vector<16x128xf32> to vector<16x128xbf16>
    %c1_7 = arith.constant 1 : index
    %c0_8 = arith.constant 0 : index
    %c0_9 = arith.constant 0 : index
    %9 = vector.load %arg2[%c1_7, %c0_8, %c0_9] : memref<3x128x128xbf16, #tpu.memory_space<vmem>>, vector<1x128x128xbf16>
    %10 = vector.shape_cast %9 : vector<1x128x128xbf16> to vector<128x128xbf16>
    %cst_10 = arith.constant dense<0.000000e+00> : vector<16x128xf32>
    %11 = tpu.matmul %8, %10, %cst_10 {dimension_numbers = #tpu.dot_dimension_numbers<[1], [0], [0], [1], [0, 0, 1, 1], [], []>} : vector<16x128xbf16>, vector<128x128xbf16>, vector<16x128xf32> -> vector<16x128xf32>
    %12 = arith.addf %5, %11 : vector<16x128xf32>
    %c0_11 = arith.constant 0 : index
    %c2 = arith.constant 2 : index
    %c0_12 = arith.constant 0 : index
    %13 = vector.load %arg1[%c0_11, %c2, %c0_12] : memref<1x18x128xf32, #tpu.memory_space<vmem>>, vector<1x16x128xf32>
    %14 = vector.shape_cast %13 : vector<1x16x128xf32> to vector<16x128xf32>
    %15 = arith.truncf %14 : vector<16x128xf32> to vector<16x128xbf16>
    %c2_13 = arith.constant 2 : index
    %c0_14 = arith.constant 0 : index
    %c0_15 = arith.constant 0 : index
    %16 = vector.load %arg2[%c2_13, %c0_14, %c0_15] : memref<3x128x128xbf16, #tpu.memory_space<vmem>>, vector<1x128x128xbf16>
    %17 = vector.shape_cast %16 : vector<1x128x128xbf16> to vector<128x128xbf16>
    %cst_16 = arith.constant dense<0.000000e+00> : vector<16x128xf32>
    %18 = tpu.matmul %15, %17, %cst_16 {dimension_numbers = #tpu.dot_dimension_numbers<[1], [0], [0], [1], [0, 0, 1, 1], [], []>} : vector<16x128xbf16>, vector<128x128xbf16>, vector<16x128xf32> -> vector<16x128xf32>
    %19 = arith.addf %12, %18 : vector<16x128xf32>
    %cst_17 = arith.constant dense<0.000000e+00> : vector<128xf32>
    %20 = vector.multi_reduction <add>, %19, %cst_17 [0] : vector<16x128xf32> to vector<128xf32>
    %21 = vector.shape_cast %20 : vector<128xf32> to vector<1x128xf32>
    %22 = arith.mulf %19, %19 : vector<16x128xf32>
    %cst_18 = arith.constant dense<0.000000e+00> : vector<128xf32>
    %23 = vector.multi_reduction <add>, %22, %cst_18 [0] : vector<16x128xf32> to vector<128xf32>
    %24 = vector.shape_cast %23 : vector<128xf32> to vector<1x128xf32>
    %25 = tpu.concatenate %21, %24 in 0 : vector<1x128xf32>, vector<1x128xf32> -> vector<2x128xf32>
    %c0_19 = arith.constant 0 : index
    %c0_20 = arith.constant 0 : index
    %c0_21 = arith.constant 0 : index
    %26 = vector.load %arg3[%c0_19, %c0_20, %c0_21] : memref<1x2x128xf32, #tpu.memory_space<vmem>>, vector<1x2x128xf32>
    %27 = vector.shape_cast %26 : vector<1x2x128xf32> to vector<2x128xf32>
    %28 = vector.shape_cast %25 : vector<2x128xf32> to vector<1x2x128xf32>
    tpu.vector_store %arg3[%c0_19, %c0_20, %c0_21], %28 {strides = array<i32>} : memref<1x2x128xf32, #tpu.memory_space<vmem>>, vector<1x2x128xf32>,
    return
  }
  func.func @transform_0(%arg0: i32) -> (i32, i32, i32) {
    %c0_i32 = arith.constant 0 : i32
    %c0_i32_0 = arith.constant 0 : i32
    %c0_i32_1 = arith.constant 0 : i32
    return %arg0, %c0_i32, %c0_i32_0 : i32, i32, i32
  }
  func.func @transform_1(%arg0: i32) -> (i32, i32, i32) {
    %c0_i32 = arith.constant 0 : i32
    %c0_i32_0 = arith.constant 0 : i32
    %c0_i32_1 = arith.constant 0 : i32
    %c0_i32_2 = arith.constant 0 : i32
    return %c0_i32, %c0_i32_0, %c0_i32_1 : i32, i32, i32
  }
  func.func @transform_2(%arg0: i32) -> (i32, i32, i32) {
    %c0_i32 = arith.constant 0 : i32
    %c0_i32_0 = arith.constant 0 : i32
    %c0_i32_1 = arith.constant 0 : i32
    return %arg0, %c0_i32, %c0_i32_0 : i32, i32, i32
  }
}

module attributes {stable_mosaic.version = 11 : i64} {
  func.func @_stage2_kernel(%arg0: i32, %arg1: memref<1x18x128xf32, #tpu.memory_space<vmem>>, %arg2: memref<3x128x128xbf16, #tpu.memory_space<vmem>>, %arg3: memref<1x128xf32, #tpu.memory_space<vmem>>, %arg4: memref<1x128xf32, #tpu.memory_space<vmem>>, %arg5: memref<3x128x128xbf16, #tpu.memory_space<vmem>>, %arg6: memref<1x16x128xf32, #tpu.memory_space<vmem>>, %arg7: memref<1x2x128xf32, #tpu.memory_space<vmem>>, %arg8: memref<18x128xf32, #tpu.memory_space<vmem>>) attributes {dimension_semantics = [#tpu.dimension_semantics<parallel>], iteration_bounds = array<i64: 2>, scalar_prefetch = 0 : i64, scratch_operands = 1 : i64, tpu.core_type = #tpu.core_type<tc>, window_params = [{transform_indices = @transform_0, window_bounds = array<i64: 1, 18, 128>}, {pipeline_mode = #tpu.pipeline_mode<synchronous>, transform_indices = @transform_1, window_bounds = array<i64: 3, 128, 128>}, {pipeline_mode = #tpu.pipeline_mode<synchronous>, transform_indices = @transform_2, window_bounds = array<i64: 1, 128>}, {pipeline_mode = #tpu.pipeline_mode<synchronous>, transform_indices = @transform_3, window_bounds = array<i64: 1, 128>}, {pipeline_mode = #tpu.pipeline_mode<synchronous>, transform_indices = @transform_4, window_bounds = array<i64: 3, 128, 128>}, {transform_indices = @transform_5, window_bounds = array<i64: 1, 16, 128>}, {transform_indices = @transform_6, window_bounds = array<i64: 1, 2, 128>}]} {
    %c0 = arith.constant 0 : index
    %c0_0 = arith.constant 0 : index
    %c0_1 = arith.constant 0 : index
    %0 = vector.load %arg1[%c0, %c0_0, %c0_1] : memref<1x18x128xf32, #tpu.memory_space<vmem>>, vector<1x16x128xf32>
    %1 = vector.shape_cast %0 : vector<1x16x128xf32> to vector<16x128xf32>
    %2 = arith.truncf %1 : vector<16x128xf32> to vector<16x128xbf16>
    %c0_2 = arith.constant 0 : index
    %c0_3 = arith.constant 0 : index
    %c0_4 = arith.constant 0 : index
    %3 = vector.load %arg2[%c0_2, %c0_3, %c0_4] : memref<3x128x128xbf16, #tpu.memory_space<vmem>>, vector<1x128x128xbf16>
    %4 = vector.shape_cast %3 : vector<1x128x128xbf16> to vector<128x128xbf16>
    %cst = arith.constant dense<0.000000e+00> : vector<16x128xf32>
    %5 = tpu.matmul %2, %4, %cst {dimension_numbers = #tpu.dot_dimension_numbers<[1], [0], [0], [1], [0, 0, 1, 1], [], []>} : vector<16x128xbf16>, vector<128x128xbf16>, vector<16x128xf32> -> vector<16x128xf32>
    %c0_5 = arith.constant 0 : index
    %c1 = arith.constant 1 : index
    %c0_6 = arith.constant 0 : index
    %6 = vector.load %arg1[%c0_5, %c1, %c0_6] : memref<1x18x128xf32, #tpu.memory_space<vmem>>, vector<1x16x128xf32>
    %7 = vector.shape_cast %6 : vector<1x16x128xf32> to vector<16x128xf32>
    %8 = arith.truncf %7 : vector<16x128xf32> to vector<16x128xbf16>
    %c1_7 = arith.constant 1 : index
    %c0_8 = arith.constant 0 : index
    %c0_9 = arith.constant 0 : index
    %9 = vector.load %arg2[%c1_7, %c0_8, %c0_9] : memref<3x128x128xbf16, #tpu.memory_space<vmem>>, vector<1x128x128xbf16>
    %10 = vector.shape_cast %9 : vector<1x128x128xbf16> to vector<128x128xbf16>
    %cst_10 = arith.constant dense<0.000000e+00> : vector<16x128xf32>
    %11 = tpu.matmul %8, %10, %cst_10 {dimension_numbers = #tpu.dot_dimension_numbers<[1], [0], [0], [1], [0, 0, 1, 1], [], []>} : vector<16x128xbf16>, vector<128x128xbf16>, vector<16x128xf32> -> vector<16x128xf32>
    %12 = arith.addf %5, %11 : vector<16x128xf32>
    %c0_11 = arith.constant 0 : index
    %c2 = arith.constant 2 : index
    %c0_12 = arith.constant 0 : index
    %13 = vector.load %arg1[%c0_11, %c2, %c0_12] : memref<1x18x128xf32, #tpu.memory_space<vmem>>, vector<1x16x128xf32>
    %14 = vector.shape_cast %13 : vector<1x16x128xf32> to vector<16x128xf32>
    %15 = arith.truncf %14 : vector<16x128xf32> to vector<16x128xbf16>
    %c2_13 = arith.constant 2 : index
    %c0_14 = arith.constant 0 : index
    %c0_15 = arith.constant 0 : index
    %16 = vector.load %arg2[%c2_13, %c0_14, %c0_15] : memref<3x128x128xbf16, #tpu.memory_space<vmem>>, vector<1x128x128xbf16>
    %17 = vector.shape_cast %16 : vector<1x128x128xbf16> to vector<128x128xbf16>
    %cst_16 = arith.constant dense<0.000000e+00> : vector<16x128xf32>
    %18 = tpu.matmul %15, %17, %cst_16 {dimension_numbers = #tpu.dot_dimension_numbers<[1], [0], [0], [1], [0, 0, 1, 1], [], []>} : vector<16x128xbf16>, vector<128x128xbf16>, vector<16x128xf32> -> vector<16x128xf32>
    %19 = arith.addf %12, %18 : vector<16x128xf32>
    %c0_17 = arith.constant 0 : index
    %c0_18 = arith.constant 0 : index
    %20 = vector.load %arg3[%c0_17, %c0_18] : memref<1x128xf32, #tpu.memory_space<vmem>>, vector<1x128xf32>
    %21 = vector.broadcast %20 : vector<1x128xf32> to vector<16x128xf32>
    %22 = arith.mulf %19, %21 : vector<16x128xf32>
    %c0_19 = arith.constant 0 : index
    %c0_20 = arith.constant 0 : index
    %23 = vector.load %arg4[%c0_19, %c0_20] : memref<1x128xf32, #tpu.memory_space<vmem>>, vector<1x128xf32>
    %24 = vector.broadcast %23 : vector<1x128xf32> to vector<16x128xf32>
    %25 = arith.addf %22, %24 : vector<16x128xf32>
    %cst_21 = arith.constant 0.000000e+00 : f32
    %26 = vector.broadcast %cst_21 : f32 to vector<16x128xf32>
    %27 = arith.maximumf %25, %26 : vector<16x128xf32>
    %cst_22 = arith.constant 0.000000e+00 : f32
    %28 = vector.broadcast %cst_22 : f32 to vector<18x128xf32>
    %c0_23 = arith.constant 0 : index
    %c0_24 = arith.constant 0 : index
    %29 = vector.load %arg8[%c0_23, %c0_24] : memref<18x128xf32, #tpu.memory_space<vmem>>, vector<18x128xf32>
    tpu.vector_store %arg8[%c0_23, %c0_24], %28 {strides = array<i32>} : memref<18x128xf32, #tpu.memory_space<vmem>>, vector<18x128xf32>,
    %c1_25 = arith.constant 1 : index
    %c0_26 = arith.constant 0 : index
    %30 = vector.load %arg8[%c1_25, %c0_26] : memref<18x128xf32, #tpu.memory_space<vmem>>, vector<16x128xf32>
    tpu.vector_store %arg8[%c1_25, %c0_26], %27 {strides = array<i32>} : memref<18x128xf32, #tpu.memory_space<vmem>>, vector<16x128xf32>,
    %c0_27 = arith.constant 0 : index
    %c0_28 = arith.constant 0 : index
    %31 = vector.load %arg8[%c0_27, %c0_28] : memref<18x128xf32, #tpu.memory_space<vmem>>, vector<16x128xf32>
    %32 = arith.truncf %31 : vector<16x128xf32> to vector<16x128xbf16>
    %c0_29 = arith.constant 0 : index
    %c0_30 = arith.constant 0 : index
    %c0_31 = arith.constant 0 : index
    %33 = vector.load %arg5[%c0_29, %c0_30, %c0_31] : memref<3x128x128xbf16, #tpu.memory_space<vmem>>, vector<1x128x128xbf16>
    %34 = vector.shape_cast %33 : vector<1x128x128xbf16> to vector<128x128xbf16>
    %cst_32 = arith.constant dense<0.000000e+00> : vector<16x128xf32>
    %35 = tpu.matmul %32, %34, %cst_32 {dimension_numbers = #tpu.dot_dimension_numbers<[1], [0], [0], [1], [0, 0, 1, 1], [], []>} : vector<16x128xbf16>, vector<128x128xbf16>, vector<16x128xf32> -> vector<16x128xf32>
    %c1_33 = arith.constant 1 : index
    %c0_34 = arith.constant 0 : index
    %36 = vector.load %arg8[%c1_33, %c0_34] : memref<18x128xf32, #tpu.memory_space<vmem>>, vector<16x128xf32>
    %37 = arith.truncf %36 : vector<16x128xf32> to vector<16x128xbf16>
    %c1_35 = arith.constant 1 : index
    %c0_36 = arith.constant 0 : index
    %c0_37 = arith.constant 0 : index
    %38 = vector.load %arg5[%c1_35, %c0_36, %c0_37] : memref<3x128x128xbf16, #tpu.memory_space<vmem>>, vector<1x128x128xbf16>
    %39 = vector.shape_cast %38 : vector<1x128x128xbf16> to vector<128x128xbf16>
    %cst_38 = arith.constant dense<0.000000e+00> : vector<16x128xf32>
    %40 = tpu.matmul %37, %39, %cst_38 {dimension_numbers = #tpu.dot_dimension_numbers<[1], [0], [0], [1], [0, 0, 1, 1], [], []>} : vector<16x128xbf16>, vector<128x128xbf16>, vector<16x128xf32> -> vector<16x128xf32>
    %41 = arith.addf %35, %40 : vector<16x128xf32>
    %c2_39 = arith.constant 2 : index
    %c0_40 = arith.constant 0 : index
    %42 = vector.load %arg8[%c2_39, %c0_40] : memref<18x128xf32, #tpu.memory_space<vmem>>, vector<16x128xf32>
    %43 = arith.truncf %42 : vector<16x128xf32> to vector<16x128xbf16>
    %c2_41 = arith.constant 2 : index
    %c0_42 = arith.constant 0 : index
    %c0_43 = arith.constant 0 : index
    %44 = vector.load %arg5[%c2_41, %c0_42, %c0_43] : memref<3x128x128xbf16, #tpu.memory_space<vmem>>, vector<1x128x128xbf16>
    %45 = vector.shape_cast %44 : vector<1x128x128xbf16> to vector<128x128xbf16>
    %cst_44 = arith.constant dense<0.000000e+00> : vector<16x128xf32>
    %46 = tpu.matmul %43, %45, %cst_44 {dimension_numbers = #tpu.dot_dimension_numbers<[1], [0], [0], [1], [0, 0, 1, 1], [], []>} : vector<16x128xbf16>, vector<128x128xbf16>, vector<16x128xf32> -> vector<16x128xf32>
    %47 = arith.addf %41, %46 : vector<16x128xf32>
    %c0_45 = arith.constant 0 : index
    %c0_46 = arith.constant 0 : index
    %c0_47 = arith.constant 0 : index
    %48 = vector.load %arg6[%c0_45, %c0_46, %c0_47] : memref<1x16x128xf32, #tpu.memory_space<vmem>>, vector<1x16x128xf32>
    %49 = vector.shape_cast %48 : vector<1x16x128xf32> to vector<16x128xf32>
    %50 = vector.shape_cast %47 : vector<16x128xf32> to vector<1x16x128xf32>
    tpu.vector_store %arg6[%c0_45, %c0_46, %c0_47], %50 {strides = array<i32>} : memref<1x16x128xf32, #tpu.memory_space<vmem>>, vector<1x16x128xf32>,
    %cst_48 = arith.constant dense<0.000000e+00> : vector<128xf32>
    %51 = vector.multi_reduction <add>, %47, %cst_48 [0] : vector<16x128xf32> to vector<128xf32>
    %52 = vector.shape_cast %51 : vector<128xf32> to vector<1x128xf32>
    %53 = arith.mulf %47, %47 : vector<16x128xf32>
    %cst_49 = arith.constant dense<0.000000e+00> : vector<128xf32>
    %54 = vector.multi_reduction <add>, %53, %cst_49 [0] : vector<16x128xf32> to vector<128xf32>
    %55 = vector.shape_cast %54 : vector<128xf32> to vector<1x128xf32>
    %56 = tpu.concatenate %52, %55 in 0 : vector<1x128xf32>, vector<1x128xf32> -> vector<2x128xf32>
    %c0_50 = arith.constant 0 : index
    %c0_51 = arith.constant 0 : index
    %c0_52 = arith.constant 0 : index
    %57 = vector.load %arg7[%c0_50, %c0_51, %c0_52] : memref<1x2x128xf32, #tpu.memory_space<vmem>>, vector<1x2x128xf32>
    %58 = vector.shape_cast %57 : vector<1x2x128xf32> to vector<2x128xf32>
    %59 = vector.shape_cast %56 : vector<2x128xf32> to vector<1x2x128xf32>
    tpu.vector_store %arg7[%c0_50, %c0_51, %c0_52], %59 {strides = array<i32>} : memref<1x2x128xf32, #tpu.memory_space<vmem>>, vector<1x2x128xf32>,
    return
  }
  func.func @transform_0(%arg0: i32) -> (i32, i32, i32) {
    %c0_i32 = arith.constant 0 : i32
    %c0_i32_0 = arith.constant 0 : i32
    %c0_i32_1 = arith.constant 0 : i32
    return %arg0, %c0_i32, %c0_i32_0 : i32, i32, i32
  }
  func.func @transform_1(%arg0: i32) -> (i32, i32, i32) {
    %c0_i32 = arith.constant 0 : i32
    %c0_i32_0 = arith.constant 0 : i32
    %c0_i32_1 = arith.constant 0 : i32
    %c0_i32_2 = arith.constant 0 : i32
    return %c0_i32, %c0_i32_0, %c0_i32_1 : i32, i32, i32
  }
  func.func @transform_2(%arg0: i32) -> (i32, i32) {
    %c0_i32 = arith.constant 0 : i32
    %c0_i32_0 = arith.constant 0 : i32
    %c0_i32_1 = arith.constant 0 : i32
    return %c0_i32, %c0_i32_0 : i32, i32
  }
  func.func @transform_3(%arg0: i32) -> (i32, i32) {
    %c0_i32 = arith.constant 0 : i32
    %c0_i32_0 = arith.constant 0 : i32
    %c0_i32_1 = arith.constant 0 : i32
    return %c0_i32, %c0_i32_0 : i32, i32
  }
  func.func @transform_4(%arg0: i32) -> (i32, i32, i32) {
    %c0_i32 = arith.constant 0 : i32
    %c0_i32_0 = arith.constant 0 : i32
    %c0_i32_1 = arith.constant 0 : i32
    %c0_i32_2 = arith.constant 0 : i32
    return %c0_i32, %c0_i32_0, %c0_i32_1 : i32, i32, i32
  }
  func.func @transform_5(%arg0: i32) -> (i32, i32, i32) {
    %c0_i32 = arith.constant 0 : i32
    %c0_i32_0 = arith.constant 0 : i32
    %c0_i32_1 = arith.constant 0 : i32
    return %arg0, %c0_i32, %c0_i32_0 : i32, i32, i32
  }
  func.func @transform_6(%arg0: i32) -> (i32, i32, i32) {
    %c0_i32 = arith.constant 0 : i32
    %c0_i32_0 = arith.constant 0 : i32
    %c0_i32_1 = arith.constant 0 : i32
    return %arg0, %c0_i32, %c0_i32_0 : i32, i32, i32
  }
}

</mosaic_0001>

<llo_original>
// kernel: double_conv_forward.2
$region0: #{double_conv_forward.2}
  #allocation0 [shape = 'u32[]', space=smem, size = 0x4, offset = 0x4, fixed_abs, tag = 'smem constant byte address 0x4 - core index']
  #allocation1 [shape = 'u32[144,128]{1,0:T(1,128)}', space=vmem, size = 0x12000, scoped, tag = 'internal scratch']
  %s0 = inlined_call_operand.vmem [shape: f32[2,18,128], index: 0, kind: input, shape index: {}]
  %s1 = inlined_call_operand.vmem [shape: bf16[3,128,128], index: 1, kind: input, shape index: {}]
  %s2 = inlined_call_operand.vmem [shape: f32[2,2,128], index: 2, kind: output, shape index: {}]
  %s3 = sld [smem:[#allocation0]]
  $region41: #{double_conv_forward.2} parent=0
    _
  %s5 = ssub.s32 1, %s3
  %s6 = scalar_select 0, %s5, %s3
  loop: start=0, step=1, limit=4
  $region2: #{double_conv_forward.2} parent=0 // loop_pre_header
    _
  $region3: #{double_conv_forward.2} parent=0 // loop_header
    %s8 = sphi 0, %s12
    %p9 = scmp.ge.s32.totalorder %s8, 4
    %s18 = sphi 0, %s20
    %s21 = sphi 0, %s18
    %s22 = sphi 0, %s21
    %s38 = sphi 0, %s22
    %s42 = sphi 0, %s42
    %s44 = sphi 0, %s42
    %s45 = sphi 0, %s44
    %s59 = sphi 0, %s45
    %s65 = sphi 0, %s67
    %s68 = sphi 0, %s65
    %s69 = sphi 0, %s68
    %s85 = sphi 0, %s69
  $region4: #{double_conv_forward.2} parent=0 // loop_header_branch
    %11 = sbr.rel (%p9) target = $region8
  $region5: #{double_conv_forward.2} parent=0 // loop_body
    %s13 = ssub.s32 %s8, 1
    %s14 = ssub.s32 %s8, 2
    %s15 = sadd.s32 %s8, 1
    %s16 = ssub.s32 %s8, %s15
    %p17 = scmp.eq.s32.totalorder %s16, 0
    %s19 = sadd.s32 %s18, 1
    %s20 = scalar_select %p17, %s18, %s19
    %p23 = pneg %p17
    %p24 = scmp.eq.s32.totalorder %s8, 1
    %p25 = por %p23, %p24
    %p26 = scmp.ne.s32.totalorder %s18, %s21
    %p27 = scmp.eq.s32.totalorder %s8, 0
    %p28 = por %p26, %p27
    %p29 = scmp.ne.s32.totalorder %s18, %s21
    %p30 = scmp.eq.s32.totalorder %s13, 1
    %p31 = por %p29, %p30
    %p32 = scmp.ne.s32.totalorder %s21, %s22
    %p33 = scmp.eq.s32.totalorder %s13, 0
    %p34 = por %p32, %p33
    %p35 = scmp.ne.s32.totalorder %s21, %s22
    %p36 = scmp.eq.s32.totalorder %s14, 1
    %p37 = por %p35, %p36
    %p39 = scmp.ne.s32.totalorder %s22, %s38
    %p40 = scmp.eq.s32.totalorder %s14, 0
    %p41 = por %p39, %p40
    %s43 = sadd.s32 %s42, 1
    %p46 = scmp.eq.s32.totalorder %s8, 1
    %p47 = scmp.ne.s32.totalorder %s42, %s44
    %p48 = scmp.eq.s32.totalorder %s8, 0
    %p49 = por %p47, %p48
    %p50 = scmp.ne.s32.totalorder %s42, %s44
    %p51 = scmp.eq.s32.totalorder %s13, 1
    %p52 = por %p50, %p51
    %p53 = scmp.ne.s32.totalorder %s44, %s45
    %p54 = scmp.eq.s32.totalorder %s13, 0
    %p55 = por %p53, %p54
    %p56 = scmp.ne.s32.totalorder %s44, %s45
    %p57 = scmp.eq.s32.totalorder %s14, 1
    %p58 = por %p56, %p57
    %p60 = scmp.ne.s32.totalorder %s45, %s59
    %p61 = scmp.eq.s32.totalorder %s14, 0
    %p62 = por %p60, %p61
    %s63 = ssub.s32 %s8, %s15
    %p64 = scmp.eq.s32.totalorder %s63, 0
    %s66 = sadd.s32 %s65, 1
    %s67 = scalar_select %p64, %s65, %s66
    %p70 = pneg %p64
    %p71 = scmp.eq.s32.totalorder %s8, 1
    %p72 = por %p70, %p71
    %p73 = scmp.ne.s32.totalorder %s65, %s68
    %p74 = scmp.eq.s32.totalorder %s8, 0
    %p75 = por %p73, %p74
    %p76 = scmp.ne.s32.totalorder %s65, %s68
    %p77 = scmp.eq.s32.totalorder %s13, 1
    %p78 = por %p76, %p77
    %p79 = scmp.ne.s32.totalorder %s68, %s69
    %p80 = scmp.eq.s32.totalorder %s13, 0
    %p81 = por %p79, %p80
    %p82 = scmp.ne.s32.totalorder %s68, %s69
    %p83 = scmp.eq.s32.totalorder %s14, 1
    %p84 = por %p82, %p83
    %p86 = scmp.ne.s32.totalorder %s69, %s85
    %p87 = scmp.eq.s32.totalorder %s14, 0
    %p88 = por %p86, %p87
    %p89 = scmp.le.s32.totalorder 1, %s8
    %p90 = scmp.lt.s32.totalorder %s8, 3
    %p91 = pnand %p89, %p90
    %p92 = pneg %p91
    // Predicated region
    $region9: #{double_conv_forward.2} parent=5 // pred_check
      _
    $region10: #{double_conv_forward.2} parent=5 // pred_check_branch
      %94 = sbr.rel (%p91) target = $region12
    $region11: #{double_conv_forward.2} parent=5 // pred_region
      %s95 = ssub.s32 %s8, 1
      // Predicated region
      $region13: #{double_conv_forward.2} parent=11 // pred_check
        %p96 = pneg %p55
      $region14: #{double_conv_forward.2} parent=11 // pred_check_branch
        %98 = sbr.rel (%p96) target = $region16
      $region15: #{double_conv_forward.2} parent=11 // pred_region
        _
      $region16: #{double_conv_forward.2} parent=11 // pred_fallthru
        _
    $region12: #{double_conv_forward.2} parent=5 // pred_fallthru
      _
    %p99 = scmp.lt.s32.totalorder %s8, 2
    // Predicated region
    $region17: #{double_conv_forward.2} parent=5 // pred_check
      %p100 = pneg %p99
    $region18: #{double_conv_forward.2} parent=5 // pred_check_branch
      %102 = sbr.rel (%p100) target = $region20
    $region19: #{double_conv_forward.2} parent=5 // pred_region
      // Predicated region
      $region21: #{double_conv_forward.2} parent=19 // pred_check
        %p103 = pneg %p28
      $region22: #{double_conv_forward.2} parent=19 // pred_check_branch
        %105 = sbr.rel (%p103) target = $region24
      $region23: #{double_conv_forward.2} parent=19 // pred_region
        %p106 = scmp.lt.s32.totalorder %s8, 1
        %s107 = scalar_select %p106, %s8, 1
        %s108 = smul.addr %s107, 3
        %s109 = smul.addr %s108, 8
        %s110 = scalar_lea.vmem %s0, %s109
      $region24: #{double_conv_forward.2} parent=19 // pred_fallthru
        _
    $region20: #{double_conv_forward.2} parent=5 // pred_fallthru
      _
    %p111 = scmp.le.s32.totalorder 1, %s8
    %p112 = scmp.lt.s32.totalorder %s8, 3
    %p113 = pnand %p111, %p112
    %p114 = pneg %p113
    // Predicated region
    $region25: #{double_conv_forward.2} parent=5 // pred_check
      _
    $region26: #{double_conv_forward.2} parent=5 // pred_check_branch
      %116 = sbr.rel (%p113) target = $region28
    $region27: #{double_conv_forward.2} parent=5 // pred_region
      %s117 = ssub.s32 %s8, 1
      %p118 = scmp.lt.s32.totalorder %s13, 1
      %s119 = scalar_select %p118, %s13, 1
      %s120 = smul.addr %s119, 3
      %s121 = smul.addr %s120, 8
      %s122 = scalar_lea.vmem %s0, %s121
      %p123 = pneg %p34
      %p124 = pneg %p31
      %p125 = pneg %p55
      %p126 = pneg %p52
      %p127 = pneg %p81
      %p128 = pneg %p78
      %p129 = scmp.lt.s32.totalorder %s13, 1
      %s130 = scalar_select %p129, %s13, 1
      %s131 = smul.addr %s130, 2
      %s132 = scalar_lea.vmem %s2, %s131
      %p133 = scmp.lt.s32.totalorder %s13, 1
      %s134 = scalar_select %p133, %s13, 1
      %s135 = smul.addr %s134, 3
      %s136 = smul.addr %s135, 8
      %s137 = scalar_lea.vmem %s0, %s136
      %p138 = scmp.lt.s32.totalorder %s13, 1
      %s139 = scalar_select %p138, %s13, 1
      %s140 = smul.addr %s139, 2
      %s141 = scalar_lea.vmem %s2, %s140
      %v143 = vld [vmem:[%s137] sm:$0xff]
      %v144 = vld [vmem:[%s137 + $0x8] sm:$0xff]
      %v145 = vpack.c.bf16 %v144, %v143
      %v146 = vld [vmem:[%s1] sm:$0xf]
      %v147 = vld [vmem:[%s1 + $0x4] sm:$0xf]
      %v148 = vld [vmem:[%s1 + $0x8] sm:$0xf]
      %v149 = vld [vmem:[%s1 + $0xc] sm:$0xf]
      %v150 = vld [vmem:[%s1 + $0x10] sm:$0xf]
      %v151 = vld [vmem:[%s1 + $0x14] sm:$0xf]
      %v152 = vld [vmem:[%s1 + $0x18] sm:$0xf]
      %v153 = vld [vmem:[%s1 + $0x1c] sm:$0xf]
      %v154 = vld [vmem:[%s1 + $0x20] sm:$0xf]
      %v155 = vld [vmem:[%s1 + $0x24] sm:$0xf]
      %v156 = vld [vmem:[%s1 + $0x28] sm:$0xf]
      %v157 = vld [vmem:[%s1 + $0x2c] sm:$0xf]
      %v158 = vld [vmem:[%s1 + $0x30] sm:$0xf]
      %v159 = vld [vmem:[%s1 + $0x34] sm:$0xf]
      %v160 = vld [vmem:[%s1 + $0x38] sm:$0xf]
      %v161 = vld [vmem:[%s1 + $0x3c] sm:$0xf]
      %v162 = vld [vmem:[%s137 + $0x1] sm:$0xff]
      %v163 = vld [vmem:[%s137 + $0x9] sm:$0xff]
      %v164 = vpack.c.bf16 %v163, %v162
      %s165 = scalar_lea.vmem %s1, 64
      %v166 = vld [vmem:[%s165] sm:$0xf]
      %v167 = vld [vmem:[%s165 + $0x4] sm:$0xf]
      %v168 = vld [vmem:[%s165 + $0x8] sm:$0xf]
      %v169 = vld [vmem:[%s165 + $0xc] sm:$0xf]
      %v170 = vld [vmem:[%s165 + $0x10] sm:$0xf]
      %v171 = vld [vmem:[%s165 + $0x14] sm:$0xf]
      %v172 = vld [vmem:[%s165 + $0x18] sm:$0xf]
      %v173 = vld [vmem:[%s165 + $0x1c] sm:$0xf]
      %v174 = vld [vmem:[%s165 + $0x20] sm:$0xf]
      %v175 = vld [vmem:[%s165 + $0x24] sm:$0xf]
      %v176 = vld [vmem:[%s165 + $0x28] sm:$0xf]
      %v177 = vld [vmem:[%s165 + $0x2c] sm:$0xf]
      %v178 = vld [vmem:[%s165 + $0x30] sm:$0xf]
      %v179 = vld [vmem:[%s165 + $0x34] sm:$0xf]
      %v180 = vld [vmem:[%s165 + $0x38] sm:$0xf]
      %v181 = vld [vmem:[%s165 + $0x3c] sm:$0xf]
      %v198 = vunpack.c.l.b16 %v166
      %v199 = vunpack.c.l.b16 %v167
      %v200 = vunpack.c.l.b16 %v168
      %v201 = vunpack.c.l.b16 %v169
      %v202 = vunpack.c.l.b16 %v170
      %v203 = vunpack.c.l.b16 %v171
      %v204 = vunpack.c.l.b16 %v172
      %v205 = vunpack.c.l.b16 %v173
      %v206 = vunpack.c.l.b16 %v174
      %v207 = vunpack.c.l.b16 %v175
      %v208 = vunpack.c.l.b16 %v176
      %v209 = vunpack.c.l.b16 %v177
      %v210 = vunpack.c.l.b16 %v178
      %v211 = vunpack.c.l.b16 %v179
      %v212 = vunpack.c.l.b16 %v180
      %v213 = vunpack.c.l.b16 %v181
      %v214 = vpack.c.b16 %v199, %v198
      %v215 = vpack.c.b16 %v201, %v200
      %v216 = vpack.c.b16 %v203, %v202
      %v217 = vpack.c.b16 %v205, %v204
      %v218 = vpack.c.b16 %v207, %v206
      %v219 = vpack.c.b16 %v209, %v208
      %v220 = vpack.c.b16 %v211, %v210
      %v221 = vpack.c.b16 %v213, %v212
      %230 = vmatprep.subr.bf16.mxu0 0
      %231 = vmatpush1.bf16.msra.mxu0 %v221
      %232 = vmatprep.subr.bf16.mxu0 0
      %233 = vmatpush1.bf16.msra.mxu0 %v220
      %234 = vmatprep.subr.bf16.mxu0 0
      %235 = vmatpush1.bf16.msra.mxu0 %v219
      %236 = vmatprep.subr.bf16.mxu0 0
      %237 = vmatpush1.bf16.msra.mxu0 %v218
      %238 = vmatprep.subr.bf16.mxu0 0
      %239 = vmatpush1.bf16.msra.mxu0 %v217
      %240 = vmatprep.subr.bf16.mxu0 0
      %241 = vmatpush1.bf16.msra.mxu0 %v216
      %242 = vmatprep.subr.bf16.mxu0 0
      %243 = vmatpush1.bf16.msra.mxu0 %v215
      %244 = vmatprep.subr.bf16.mxu0 0
      %245 = vmatpush1.bf16.msra.mxu0 %v214
      %246 = vmatprep.subr.bf16.mxu0 0
      %247 = vmatpush2.bf16.msra.mxu0 0
      %248 = vmatprep.subr.bf16.mxu0 0
      %249 = vmatpush2.bf16.msra.mxu0 0
      %250 = vmatprep.subr.bf16.mxu0 0
      %251 = vmatpush2.bf16.msra.mxu0 0
      %252 = vmatprep.subr.bf16.mxu0 0
      %253 = vmatpush2.bf16.msra.mxu0 0
      %254 = vmatprep.subr.bf16.mxu0 0
      %255 = vmatpush2.bf16.msra.mxu0 0
      %256 = vmatprep.subr.bf16.mxu0 0
      %257 = vmatpush2.bf16.msra.mxu0 0
      %258 = vmatprep.subr.bf16.mxu0 0
      %259 = vmatpush2.bf16.msra.mxu0 0
      %260 = vmatprep.subr.bf16.mxu0 0
      %261 = vmatpush2.bf16.msra.mxu0 0
      %262 = vmatprep.mubr.bf16.mxu0 0
      %263 = vmatmul.mubr.bf16.gmra.mxu0 %v164
      %v264 = vpop.f32.mrf.mxu0
      %v265 = vadd.f32 0.0, %v264
      %v266 = vpop.f32.mrf.mxu0
      %v267 = vpop.f32.mrf.mxu0
      %v268 = vadd.f32 0.0, %v267
      %v269 = vpop.f32.mrf.mxu0
      %270 = vdwg.mxu0
      %v287 = vunpack.c.l.b16 %v146
      %v288 = vunpack.c.l.b16 %v147
      %v289 = vunpack.c.l.b16 %v148
      %v290 = vunpack.c.l.b16 %v149
      %v291 = vunpack.c.l.b16 %v150
      %v292 = vunpack.c.l.b16 %v151
      %v293 = vunpack.c.l.b16 %v152
      %v294 = vunpack.c.l.b16 %v153
      %v295 = vunpack.c.l.b16 %v154
      %v296 = vunpack.c.l.b16 %v155
      %v297 = vunpack.c.l.b16 %v156
      %v298 = vunpack.c.l.b16 %v157
      %v299 = vunpack.c.l.b16 %v158
      %v300 = vunpack.c.l.b16 %v159
      %v301 = vunpack.c.l.b16 %v160
      %v302 = vunpack.c.l.b16 %v161
      %v303 = vpack.c.b16 %v288, %v287
      %v304 = vpack.c.b16 %v290, %v289
      %v305 = vpack.c.b16 %v292, %v291
      %v306 = vpack.c.b16 %v294, %v293
      %v307 = vpack.c.b16 %v296, %v295
      %v308 = vpack.c.b16 %v298, %v297
      %v309 = vpack.c.b16 %v300, %v299
      %v310 = vpack.c.b16 %v302, %v301
      %319 = vmatprep.subr.bf16.mxu0 0
      %320 = vmatpush1.bf16.msra.mxu0 %v310
      %321 = vmatprep.subr.bf16.mxu0 0
      %322 = vmatpush1.bf16.msra.mxu0 %v309
      %323 = vmatprep.subr.bf16.mxu0 0
      %324 = vmatpush1.bf16.msra.mxu0 %v308
      %325 = vmatprep.subr.bf16.mxu0 0
      %326 = vmatpush1.bf16.msra.mxu0 %v307
      %327 = vmatprep.subr.bf16.mxu0 0
      %328 = vmatpush1.bf16.msra.mxu0 %v306
      %329 = vmatprep.subr.bf16.mxu0 0
      %330 = vmatpush1.bf16.msra.mxu0 %v305
      %331 = vmatprep.subr.bf16.mxu0 0
      %332 = vmatpush1.bf16.msra.mxu0 %v304
      %333 = vmatprep.subr.bf16.mxu0 0
      %334 = vmatpush1.bf16.msra.mxu0 %v303
      %335 = vmatprep.subr.bf16.mxu0 0
      %336 = vmatpush2.bf16.msra.mxu0 0
      %337 = vmatprep.subr.bf16.mxu0 0
      %338 = vmatpush2.bf16.msra.mxu0 0
      %339 = vmatprep.subr.bf16.mxu0 0
      %340 = vmatpush2.bf16.msra.mxu0 0
      %341 = vmatprep.subr.bf16.mxu0 0
      %342 = vmatpush2.bf16.msra.mxu0 0
      %343 = vmatprep.subr.bf16.mxu0 0
      %344 = vmatpush2.bf16.msra.mxu0 0
      %345 = vmatprep.subr.bf16.mxu0 0
      %346 = vmatpush2.bf16.msra.mxu0 0
      %347 = vmatprep.subr.bf16.mxu0 0
      %348 = vmatpush2.bf16.msra.mxu0 0
      %349 = vmatprep.subr.bf16.mxu0 0
      %350 = vmatpush2.bf16.msra.mxu0 0
      %351 = vmatprep.mubr.bf16.mxu0 0
      %352 = vmatmul.mubr.bf16.gmra.mxu0 %v145
      %v353 = vpop.f32.mrf.mxu0
      %v354 = vadd.f32 %v265, %v353
      %v355 = vpop.f32.mrf.mxu0
      %v356 = vpop.f32.mrf.mxu0
      %v357 = vadd.f32 %v268, %v356
      %v358 = vpop.f32.mrf.mxu0
      %359 = vdwg.mxu0
      %v360 = vld [vmem:[%s137 + $0x2] sm:$0xff]
      %v361 = vld [vmem:[%s137 + $0xa] sm:$0xff]
      %v362 = vpack.c.bf16 %v361, %v360
      %s363 = scalar_lea.vmem %s1, 128
      %v364 = vld [vmem:[%s363] sm:$0xf]
      %v365 = vld [vmem:[%s363 + $0x4] sm:$0xf]
      %v366 = vld [vmem:[%s363 + $0x8] sm:$0xf]
      %v367 = vld [vmem:[%s363 + $0xc] sm:$0xf]
      %v368 = vld [vmem:[%s363 + $0x10] sm:$0xf]
      %v369 = vld [vmem:[%s363 + $0x14] sm:$0xf]
      %v370 = vld [vmem:[%s363 + $0x18] sm:$0xf]
      %v371 = vld [vmem:[%s363 + $0x1c] sm:$0xf]
      %v372 = vld [vmem:[%s363 + $0x20] sm:$0xf]
      %v373 = vld [vmem:[%s363 + $0x24] sm:$0xf]
      %v374 = vld [vmem:[%s363 + $0x28] sm:$0xf]
      %v375 = vld [vmem:[%s363 + $0x2c] sm:$0xf]
      %v376 = vld [vmem:[%s363 + $0x30] sm:$0xf]
      %v377 = vld [vmem:[%s363 + $0x34] sm:$0xf]
      %v378 = vld [vmem:[%s363 + $0x38] sm:$0xf]
      %v379 = vld [vmem:[%s363 + $0x3c] sm:$0xf]
      %v396 = vunpack.c.l.b16 %v364
      %v397 = vunpack.c.l.b16 %v365
      %v398 = vunpack.c.l.b16 %v366
      %v399 = vunpack.c.l.b16 %v367
      %v400 = vunpack.c.l.b16 %v368
      %v401 = vunpack.c.l.b16 %v369
      %v402 = vunpack.c.l.b16 %v370
      %v403 = vunpack.c.l.b16 %v371
      %v404 = vunpack.c.l.b16 %v372
      %v405 = vunpack.c.l.b16 %v373
      %v406 = vunpack.c.l.b16 %v374
      %v407 = vunpack.c.l.b16 %v375
      %v408 = vunpack.c.l.b16 %v376
      %v409 = vunpack.c.l.b16 %v377
      %v410 = vunpack.c.l.b16 %v378
      %v411 = vunpack.c.l.b16 %v379
      %v412 = vpack.c.b16 %v397, %v396
      %v413 = vpack.c.b16 %v399, %v398
      %v414 = vpack.c.b16 %v401, %v400
      %v415 = vpack.c.b16 %v403, %v402
      %v416 = vpack.c.b16 %v405, %v404
      %v417 = vpack.c.b16 %v407, %v406
      %v418 = vpack.c.b16 %v409, %v408
      %v419 = vpack.c.b16 %v411, %v410
      %428 = vmatprep.subr.bf16.mxu0 0
      %429 = vmatpush1.bf16.msra.mxu0 %v419
      %430 = vmatprep.subr.bf16.mxu0 0
      %431 = vmatpush1.bf16.msra.mxu0 %v418
      %432 = vmatprep.subr.bf16.mxu0 0
      %433 = vmatpush1.bf16.msra.mxu0 %v417
      %434 = vmatprep.subr.bf16.mxu0 0
      %435 = vmatpush1.bf16.msra.mxu0 %v416
      %436 = vmatprep.subr.bf16.mxu0 0
      %437 = vmatpush1.bf16.msra.mxu0 %v415
      %438 = vmatprep.subr.bf16.mxu0 0
      %439 = vmatpush1.bf16.msra.mxu0 %v414
      %440 = vmatprep.subr.bf16.mxu0 0
      %441 = vmatpush1.bf16.msra.mxu0 %v413
      %442 = vmatprep.subr.bf16.mxu0 0
      %443 = vmatpush1.bf16.msra.mxu0 %v412
      %444 = vmatprep.subr.bf16.mxu0 0
      %445 = vmatpush2.bf16.msra.mxu0 0
      %446 = vmatprep.subr.bf16.mxu0 0
      %447 = vmatpush2.bf16.msra.mxu0 0
      %448 = vmatprep.subr.bf16.mxu0 0
      %449 = vmatpush2.bf16.msra.mxu0 0
      %450 = vmatprep.subr.bf16.mxu0 0
      %451 = vmatpush2.bf16.msra.mxu0 0
      %452 = vmatprep.subr.bf16.mxu0 0
      %453 = vmatpush2.bf16.msra.mxu0 0
      %454 = vmatprep.subr.bf16.mxu0 0
      %455 = vmatpush2.bf16.msra.mxu0 0
      %456 = vmatprep.subr.bf16.mxu0 0
      %457 = vmatpush2.bf16.msra.mxu0 0
      %458 = vmatprep.subr.bf16.mxu0 0
      %459 = vmatpush2.bf16.msra.mxu0 0
      %460 = vmatprep.mubr.bf16.mxu0 0
      %461 = vmatmul.mubr.bf16.gmra.mxu0 %v362
      %v462 = vpop.f32.mrf.mxu0
      %v463 = vadd.f32 0.0, %v462
      %v464 = vpop.f32.mrf.mxu0
      %v465 = vpop.f32.mrf.mxu0
      %v466 = vadd.f32 0.0, %v465
      %v467 = vpop.f32.mrf.mxu0
      %468 = vdwg.mxu0
      %v469 = vadd.f32 %v354, %v463
      %v470 = vadd.f32 %v357, %v466
      %v471 = vadd.f32 %v469, %v470
      %v472 = vrot.slane %v471, 4
      %v473 = vadd.f32 %v471, %v472
      %v474 = vrot.slane %v473, 2
      %v475 = vadd.f32 %v473, %v474
      %v476 = vrot.slane %v475, 1
      %v477 = vadd.f32 %v475, %v476
      %v478 = vmul.f32 %v469, %v469
      %v479 = vmul.f32 %v470, %v470
      %v480 = vadd.f32 %v478, %v479
      %v481 = vrot.slane %v480, 4
      %v482 = vadd.f32 %v480, %v481
      %v483 = vrot.slane %v482, 2
      %v484 = vadd.f32 %v482, %v483
      %v485 = vrot.slane %v484, 1
      %v486 = vadd.f32 %v484, %v485
      %vm487 = vcmask 1040384
      %v488 = vsel %vm487, %v477, %v486
      %489 = vst [vmem:[%s141] sm:$0x3] %v488
      %p490 = scmp.lt.s32.totalorder %s13, 1
      %s491 = scalar_select %p490, %s13, 1
      %s492 = smul.addr %s491, 2
      %s493 = scalar_lea.vmem %s2, %s492
      // Predicated region
      $region29: #{double_conv_forward.2} parent=27 // pred_check
        %p494 = pneg %p78
      $region30: #{double_conv_forward.2} parent=27 // pred_check_branch
        %496 = sbr.rel (%p494) target = $region32
      $region31: #{double_conv_forward.2} parent=27 // pred_region
        _
      $region32: #{double_conv_forward.2} parent=27 // pred_fallthru
        _
    $region28: #{double_conv_forward.2} parent=5 // pred_fallthru
      _
    %p497 = scmp.le.s32.totalorder 2, %s8
    // Predicated region
    $region33: #{double_conv_forward.2} parent=5 // pred_check
      %p498 = pneg %p497
    $region34: #{double_conv_forward.2} parent=5 // pred_check_branch
      %500 = sbr.rel (%p498) target = $region36
    $region35: #{double_conv_forward.2} parent=5 // pred_region
      %s501 = ssub.s32 %s8, 2
      // Predicated region
      $region37: #{double_conv_forward.2} parent=35 // pred_check
        %p502 = pneg %p84
      $region38: #{double_conv_forward.2} parent=35 // pred_check_branch
        %504 = sbr.rel (%p502) target = $region40
      $region39: #{double_conv_forward.2} parent=35 // pred_region
        %p505 = scmp.lt.s32.totalorder %s14, 1
        %s506 = scalar_select %p505, %s14, 1
        %s507 = smul.addr %s506, 2
        %s508 = scalar_lea.vmem %s2, %s507
      $region40: #{double_conv_forward.2} parent=35 // pred_fallthru
        _
    $region36: #{double_conv_forward.2} parent=5 // pred_fallthru
      _
  $region6: #{double_conv_forward.2} parent=0 // loop_footer
    %s12 = sadd.s32 1, %s8
  $region7: #{double_conv_forward.2} parent=0 // loop_footer_branch
    %7 = sbr.rel target = $region3
  $region8: #{double_conv_forward.2} parent=0 // loop_exit
    _

// kernel: tile.28
$region0: #{tile.28}
  #allocation0 [shape = 's32[1]{0}', space=sflag, size = 0x4, scoped, tag = 'scoped memory for tile.28']
  %s0 = inlined_call_operand.vmem [shape: f32[8], index: 0, kind: input, shape index: {}]
  %s1 = inlined_call_operand.vmem [shape: f32[16,8], index: 1, kind: output, shape index: {}]
  // Predicated region
  $region2: #{tile.28} parent=0 // pred_check
    _
  $region3: #{tile.28} parent=0 // pred_check_branch
    %3 = sbr.rel (0) target = $region5
  $region4: #{tile.28} parent=0 // pred_region
    _
  $region5: #{tile.28} parent=0 // pred_fallthru
    _
  %v4 = vld [vmem:[%s0] ss:$0 sm:$0xff]
  %5 = vst [vmem:[%s1] sm:$0xff] %v4
  %s6 = scalar_lea.vmem %s1, 8
  %7 = vst [vmem:[%s6] sm:$0xff] %v4

// kernel: tile.29
$region0: #{tile.29}
  %s0 = inlined_call_operand.vmem [shape: f32[16,8], index: 0, kind: input, shape index: {}]
  %s1 = inlined_call_operand.vmem [shape: f32[1,128], index: 1, kind: output, shape index: {}]
  $region1: #{tile.29} parent=0
    #allocation0 [shape = 'u8[4096]{0}', space=vmem, size = 0x1000, scoped, tag = 'scoped mem for output reshape']
    %v2 = vld [vmem:[%s0] sm:$0x1]
    %vm3 = vcmask 64512
    %4 = vst.msk [vmem:[#allocation0] sm:$0x1] %vm3, %v2
    %s5 = scalar_lea.vmem %s0, 15
    %v6 = vld [vmem:[%s5] sm:$0x1]
    %7 = vrot.lane.b32.xlu0 %v6, 120
    %v8 = vpop.permute.xlu0 %7
    %vm9 = vcmask 1048512
    %10 = vst.msk [vmem:[#allocation0] sm:$0x1] %vm9, %v8
    %s11 = scalar_lea.vmem %s0, 14
    %v12 = vld [vmem:[%s11] sm:$0x1]
    %13 = vrot.lane.b32.xlu0 %v12, 112
    %v14 = vpop.permute.xlu0 %13
    %vm15 = vcmask 982912
    %16 = vst.msk [vmem:[#allocation0] sm:$0x1] %vm15, %v14
    %s17 = scalar_lea.vmem %s0, 13
    %v18 = vld [vmem:[%s17] sm:$0x1]
    %19 = vrot.lane.b32.xlu0 %v18, 104
    %v20 = vpop.permute.xlu0 %19
    %vm21 = vcmask 917312
    %22 = vst.msk [vmem:[#allocation0] sm:$0x1] %vm21, %v20
    %s23 = scalar_lea.vmem %s0, 12
    %v24 = vld [vmem:[%s23] sm:$0x1]
    %25 = vrot.lane.b32.xlu0 %v24, 96
    %v26 = vpop.permute.xlu0 %25
    %vm27 = vcmask 851712
    %28 = vst.msk [vmem:[#allocation0] sm:$0x1] %vm27, %v26
    %s29 = scalar_lea.vmem %s0, 11
    %v30 = vld [vmem:[%s29] sm:$0x1]
    %31 = vrot.lane.b32.xlu0 %v30, 88
    %v32 = vpop.permute.xlu0 %31
    %vm33 = vcmask 786112
    %34 = vst.msk [vmem:[#allocation0] sm:$0x1] %vm33, %v32
    %s35 = scalar_lea.vmem %s0, 10
    %v36 = vld [vmem:[%s35] sm:$0x1]
    %37 = vrot.lane.b32.xlu0 %v36, 80
    %v38 = vpop.permute.xlu0 %37
    %vm39 = vcmask 720512
    %40 = vst.msk [vmem:[#allocation0] sm:$0x1] %vm39, %v38
    %s41 = scalar_lea.vmem %s0, 9
    %v42 = vld [vmem:[%s41] sm:$0x1]
    %43 = vrot.lane.b32.xlu0 %v42, 72
    %v44 = vpop.permute.xlu0 %43
    %vm45 = vcmask 654912
    %46 = vst.msk [vmem:[#allocation0] sm:$0x1] %vm45, %v44
    %s47 = scalar_lea.vmem %s0, 8
    %v48 = vld [vmem:[%s47] sm:$0x1]
    %49 = vrot.lane.b32.xlu0 %v48, 64
    %v50 = vpop.permute.xlu0 %49
    %vm51 = vcmask 589312
    %52 = vst.msk [vmem:[#allocation0] sm:$0x1] %vm51, %v50
    %s53 = scalar_lea.vmem %s0, 7
    %v54 = vld [vmem:[%s53] sm:$0x1]
    %55 = vrot.lane.b32.xlu0 %v54, 56
    %v56 = vpop.permute.xlu0 %55
    %vm57 = vcmask 523712
    %58 = vst.msk [vmem:[#allocation0] sm:$0x1] %vm57, %v56
    %s59 = scalar_lea.vmem %s0, 6
    %v60 = vld [vmem:[%s59] sm:$0x1]
    %61 = vrot.lane.b32.xlu0 %v60, 48
    %v62 = vpop.permute.xlu0 %61
    %vm63 = vcmask 458112
    %64 = vst.msk [vmem:[#allocation0] sm:$0x1] %vm63, %v62
    %s65 = scalar_lea.vmem %s0, 5
    %v66 = vld [vmem:[%s65] sm:$0x1]
    %67 = vrot.lane.b32.xlu0 %v66, 40
    %v68 = vpop.permute.xlu0 %67
    %vm69 = vcmask 392512
    %70 = vst.msk [vmem:[#allocation0] sm:$0x1] %vm69, %v68
    %s71 = scalar_lea.vmem %s0, 4
    %v72 = vld [vmem:[%s71] sm:$0x1]
    %73 = vrot.lane.b32.xlu0 %v72, 32
    %v74 = vpop.permute.xlu0 %73
    %vm75 = vcmask 326912
    %76 = vst.msk [vmem:[#allocation0] sm:$0x1] %vm75, %v74
    %s77 = scalar_lea.vmem %s0, 3
    %v78 = vld [vmem:[%s77] sm:$0x1]
    %79 = vrot.lane.b32.xlu0 %v78, 24
    %v80 = vpop.permute.xlu0 %79
    %vm81 = vcmask 261312
    %82 = vst.msk [vmem:[#allocation0] sm:$0x1] %vm81, %v80
    %s83 = scalar_lea.vmem %s0, 2
    %v84 = vld [vmem:[%s83] sm:$0x1]
    %85 = vrot.lane.b32.xlu0 %v84, 16
    %v86 = vpop.permute.xlu0 %85
    %vm87 = vcmask 195712
    %88 = vst.msk [vmem:[#allocation0] sm:$0x1] %vm87, %v86
    %s89 = scalar_lea.vmem %s0, 1
    %v90 = vld [vmem:[%s89] sm:$0x1]
    %91 = vrot.lane.b32.xlu0 %v90, 8
    %v92 = vpop.permute.xlu0 %91
    %vm93 = vcmask 130112
    %94 = vst.msk [vmem:[#allocation0] sm:$0x1] %vm93, %v92
    %s96 = sshll.u32 1, 1
    %s97 = ssub.s32 %s96, 1
    %v99 = vld [vmem:[#allocation0] sm:%s97]
    %s100 = sshll.u32 1, 1
    %s101 = ssub.s32 %s100, 1
    %102 = vst [vmem:[%s1] sm:%s101] %v99

// kernel: double_conv_forward.3
$region0: #{double_conv_forward.3}
  #allocation0 [shape = 'u32[]', space=smem, size = 0x4, offset = 0x4, fixed_abs, tag = 'smem constant byte address 0x4 - core index']
  #allocation1 [shape = 'u32[144,128]{1,0:T(1,128)}', space=vmem, size = 0x12000, scoped, tag = 'internal scratch']
  #allocation2 [shape = 'f32[18,128]{1,0:T(8,128)}', space=vmem, size = 0x3000, scoped, tag = 'scratch operand']
  %s0 = inlined_call_operand.vmem [shape: f32[2,18,128], index: 0, kind: input, shape index: {}]
  %s1 = inlined_call_operand.vmem [shape: bf16[3,128,128], index: 1, kind: input, shape index: {}]
  %s2 = inlined_call_operand.vmem [shape: f32[1,128], index: 2, kind: input, shape index: {}]
  %s3 = inlined_call_operand.vmem [shape: f32[1,128], index: 3, kind: input, shape index: {}]
  %s4 = inlined_call_operand.vmem [shape: bf16[3,128,128], index: 4, kind: input, shape index: {}]
  %s5 = inlined_call_operand.vmem [shape: f32[2,16,128], index: 5, kind: output, shape index: {0}]
  %s6 = inlined_call_operand.vmem [shape: f32[2,2,128], index: 6, kind: output, shape index: {1}]
  %7 = xla_tuple %s5, %s6
  %s8 = sld [smem:[#allocation0]]
  $region61: #{double_conv_forward.3} parent=0
    _
  %s10 = ssub.s32 1, %s8
  %s11 = scalar_select 0, %s10, %s8
  loop: start=0, step=1, limit=4
  $region2: #{double_conv_forward.3} parent=0 // loop_pre_header
    _
  $region3: #{double_conv_forward.3} parent=0 // loop_header
    %s13 = sphi 0, %s17
    %p14 = scmp.ge.s32.totalorder %s13, 4
    %s23 = sphi 0, %s25
    %s26 = sphi 0, %s23
    %s27 = sphi 0, %s26
    %s43 = sphi 0, %s27
    %s47 = sphi 0, %s47
    %s49 = sphi 0, %s47
    %s50 = sphi 0, %s49
    %s64 = sphi 0, %s50
    %s68 = sphi 0, %s68
    %s70 = sphi 0, %s68
    %s71 = sphi 0, %s70
    %s85 = sphi 0, %s71
    %s89 = sphi 0, %s89
    %s91 = sphi 0, %s89
    %s92 = sphi 0, %s91
    %s106 = sphi 0, %s92
    %s110 = sphi 0, %s110
    %s112 = sphi 0, %s110
    %s113 = sphi 0, %s112
    %s127 = sphi 0, %s113
    %s133 = sphi 0, %s135
    %s136 = sphi 0, %s133
    %s137 = sphi 0, %s136
    %s153 = sphi 0, %s137
    %s159 = sphi 0, %s161
    %s162 = sphi 0, %s159
    %s163 = sphi 0, %s162
    %s179 = sphi 0, %s163
  $region4: #{double_conv_forward.3} parent=0 // loop_header_branch
    %16 = sbr.rel (%p14) target = $region8
  $region5: #{double_conv_forward.3} parent=0 // loop_body
    %s18 = ssub.s32 %s13, 1
    %s19 = ssub.s32 %s13, 2
    %s20 = sadd.s32 %s13, 1
    %s21 = ssub.s32 %s13, %s20
    %p22 = scmp.eq.s32.totalorder %s21, 0
    %s24 = sadd.s32 %s23, 1
    %s25 = scalar_select %p22, %s23, %s24
    %p28 = pneg %p22
    %p29 = scmp.eq.s32.totalorder %s13, 1
    %p30 = por %p28, %p29
    %p31 = scmp.ne.s32.totalorder %s23, %s26
    %p32 = scmp.eq.s32.totalorder %s13, 0
    %p33 = por %p31, %p32
    %p34 = scmp.ne.s32.totalorder %s23, %s26
    %p35 = scmp.eq.s32.totalorder %s18, 1
    %p36 = por %p34, %p35
    %p37 = scmp.ne.s32.totalorder %s26, %s27
    %p38 = scmp.eq.s32.totalorder %s18, 0
    %p39 = por %p37, %p38
    %p40 = scmp.ne.s32.totalorder %s26, %s27
    %p41 = scmp.eq.s32.totalorder %s19, 1
    %p42 = por %p40, %p41
    %p44 = scmp.ne.s32.totalorder %s27, %s43
    %p45 = scmp.eq.s32.totalorder %s19, 0
    %p46 = por %p44, %p45
    %s48 = sadd.s32 %s47, 1
    %p51 = scmp.eq.s32.totalorder %s13, 1
    %p52 = scmp.ne.s32.totalorder %s47, %s49
    %p53 = scmp.eq.s32.totalorder %s13, 0
    %p54 = por %p52, %p53
    %p55 = scmp.ne.s32.totalorder %s47, %s49
    %p56 = scmp.eq.s32.totalorder %s18, 1
    %p57 = por %p55, %p56
    %p58 = scmp.ne.s32.totalorder %s49, %s50
    %p59 = scmp.eq.s32.totalorder %s18, 0
    %p60 = por %p58, %p59
    %p61 = scmp.ne.s32.totalorder %s49, %s50
    %p62 = scmp.eq.s32.totalorder %s19, 1
    %p63 = por %p61, %p62
    %p65 = scmp.ne.s32.totalorder %s50, %s64
    %p66 = scmp.eq.s32.totalorder %s19, 0
    %p67 = por %p65, %p66
    %s69 = sadd.s32 %s68, 1
    %p72 = scmp.eq.s32.totalorder %s13, 1
    %p73 = scmp.ne.s32.totalorder %s68, %s70
    %p74 = scmp.eq.s32.totalorder %s13, 0
    %p75 = por %p73, %p74
    %p76 = scmp.ne.s32.totalorder %s68, %s70
    %p77 = scmp.eq.s32.totalorder %s18, 1
    %p78 = por %p76, %p77
    %p79 = scmp.ne.s32.totalorder %s70, %s71
    %p80 = scmp.eq.s32.totalorder %s18, 0
    %p81 = por %p79, %p80
    %p82 = scmp.ne.s32.totalorder %s70, %s71
    %p83 = scmp.eq.s32.totalorder %s19, 1
    %p84 = por %p82, %p83
    %p86 = scmp.ne.s32.totalorder %s71, %s85
    %p87 = scmp.eq.s32.totalorder %s19, 0
    %p88 = por %p86, %p87
    %s90 = sadd.s32 %s89, 1
    %p93 = scmp.eq.s32.totalorder %s13, 1
    %p94 = scmp.ne.s32.totalorder %s89, %s91
    %p95 = scmp.eq.s32.totalorder %s13, 0
    %p96 = por %p94, %p95
    %p97 = scmp.ne.s32.totalorder %s89, %s91
    %p98 = scmp.eq.s32.totalorder %s18, 1
    %p99 = por %p97, %p98
    %p100 = scmp.ne.s32.totalorder %s91, %s92
    %p101 = scmp.eq.s32.totalorder %s18, 0
    %p102 = por %p100, %p101
    %p103 = scmp.ne.s32.totalorder %s91, %s92
    %p104 = scmp.eq.s32.totalorder %s19, 1
    %p105 = por %p103, %p104
    %p107 = scmp.ne.s32.totalorder %s92, %s106
    %p108 = scmp.eq.s32.totalorder %s19, 0
    %p109 = por %p107, %p108
    %s111 = sadd.s32 %s110, 1
    %p114 = scmp.eq.s32.totalorder %s13, 1
    %p115 = scmp.ne.s32.totalorder %s110, %s112
    %p116 = scmp.eq.s32.totalorder %s13, 0
    %p117 = por %p115, %p116
    %p118 = scmp.ne.s32.totalorder %s110, %s112
    %p119 = scmp.eq.s32.totalorder %s18, 1
    %p120 = por %p118, %p119
    %p121 = scmp.ne.s32.totalorder %s112, %s113
    %p122 = scmp.eq.s32.totalorder %s18, 0
    %p123 = por %p121, %p122
    %p124 = scmp.ne.s32.totalorder %s112, %s113
    %p125 = scmp.eq.s32.totalorder %s19, 1
    %p126 = por %p124, %p125
    %p128 = scmp.ne.s32.totalorder %s113, %s127
    %p129 = scmp.eq.s32.totalorder %s19, 0
    %p130 = por %p128, %p129
    %s131 = ssub.s32 %s13, %s20
    %p132 = scmp.eq.s32.totalorder %s131, 0
    %s134 = sadd.s32 %s133, 1
    %s135 = scalar_select %p132, %s133, %s134
    %p138 = pneg %p132
    %p139 = scmp.eq.s32.totalorder %s13, 1
    %p140 = por %p138, %p139
    %p141 = scmp.ne.s32.totalorder %s133, %s136
    %p142 = scmp.eq.s32.totalorder %s13, 0
    %p143 = por %p141, %p142
    %p144 = scmp.ne.s32.totalorder %s133, %s136
    %p145 = scmp.eq.s32.totalorder %s18, 1
    %p146 = por %p144, %p145
    %p147 = scmp.ne.s32.totalorder %s136, %s137
    %p148 = scmp.eq.s32.totalorder %s18, 0
    %p149 = por %p147, %p148
    %p150 = scmp.ne.s32.totalorder %s136, %s137
    %p151 = scmp.eq.s32.totalorder %s19, 1
    %p152 = por %p150, %p151
    %p154 = scmp.ne.s32.totalorder %s137, %s153
    %p155 = scmp.eq.s32.totalorder %s19, 0
    %p156 = por %p154, %p155
    %s157 = ssub.s32 %s13, %s20
    %p158 = scmp.eq.s32.totalorder %s157, 0
    %s160 = sadd.s32 %s159, 1
    %s161 = scalar_select %p158, %s159, %s160
    %p164 = pneg %p158
    %p165 = scmp.eq.s32.totalorder %s13, 1
    %p166 = por %p164, %p165
    %p167 = scmp.ne.s32.totalorder %s159, %s162
    %p168 = scmp.eq.s32.totalorder %s13, 0
    %p169 = por %p167, %p168
    %p170 = scmp.ne.s32.totalorder %s159, %s162
    %p171 = scmp.eq.s32.totalorder %s18, 1
    %p172 = por %p170, %p171
    %p173 = scmp.ne.s32.totalorder %s162, %s163
    %p174 = scmp.eq.s32.totalorder %s18, 0
    %p175 = por %p173, %p174
    %p176 = scmp.ne.s32.totalorder %s162, %s163
    %p177 = scmp.eq.s32.totalorder %s19, 1
    %p178 = por %p176, %p177
    %p180 = scmp.ne.s32.totalorder %s163, %s179
    %p181 = scmp.eq.s32.totalorder %s19, 0
    %p182 = por %p180, %p181
    %p183 = scmp.le.s32.totalorder 1, %s13
    %p184 = scmp.lt.s32.totalorder %s13, 3
    %p185 = pnand %p183, %p184
    %p186 = pneg %p185
    // Predicated region
    $region9: #{double_conv_forward.3} parent=5 // pred_check
      _
    $region10: #{double_conv_forward.3} parent=5 // pred_check_branch
      %188 = sbr.rel (%p185) target = $region12
    $region11: #{double_conv_forward.3} parent=5 // pred_region
      %s189 = ssub.s32 %s13, 1
      // Predicated region
      $region13: #{double_conv_forward.3} parent=11 // pred_check
        %p190 = pneg %p60
      $region14: #{double_conv_forward.3} parent=11 // pred_check_branch
        %192 = sbr.rel (%p190) target = $region16
      $region15: #{double_conv_forward.3} parent=11 // pred_region
        _
      $region16: #{double_conv_forward.3} parent=11 // pred_fallthru
        _
      // Predicated region
      $region17: #{double_conv_forward.3} parent=11 // pred_check
        %p193 = pneg %p81
      $region18: #{double_conv_forward.3} parent=11 // pred_check_branch
        %195 = sbr.rel (%p193) target = $region20
      $region19: #{double_conv_forward.3} parent=11 // pred_region
        _
      $region20: #{double_conv_forward.3} parent=11 // pred_fallthru
        _
      // Predicated region
      $region21: #{double_conv_forward.3} parent=11 // pred_check
        %p196 = pneg %p102
      $region22: #{double_conv_forward.3} parent=11 // pred_check_branch
        %198 = sbr.rel (%p196) target = $region24
      $region23: #{double_conv_forward.3} parent=11 // pred_region
        _
      $region24: #{double_conv_forward.3} parent=11 // pred_fallthru
        _
      // Predicated region
      $region25: #{double_conv_forward.3} parent=11 // pred_check
        %p199 = pneg %p123
      $region26: #{double_conv_forward.3} parent=11 // pred_check_branch
        %201 = sbr.rel (%p199) target = $region28
      $region27: #{double_conv_forward.3} parent=11 // pred_region
        _
      $region28: #{double_conv_forward.3} parent=11 // pred_fallthru
        _
    $region12: #{double_conv_forward.3} parent=5 // pred_fallthru
      _
    %p202 = scmp.lt.s32.totalorder %s13, 2
    // Predicated region
    $region29: #{double_conv_forward.3} parent=5 // pred_check
      %p203 = pneg %p202
    $region30: #{double_conv_forward.3} parent=5 // pred_check_branch
      %205 = sbr.rel (%p203) target = $region32
    $region31: #{double_conv_forward.3} parent=5 // pred_region
      // Predicated region
      $region33: #{double_conv_forward.3} parent=31 // pred_check
        %p206 = pneg %p33
      $region34: #{double_conv_forward.3} parent=31 // pred_check_branch
        %208 = sbr.rel (%p206) target = $region36
      $region35: #{double_conv_forward.3} parent=31 // pred_region
        %p209 = scmp.lt.s32.totalorder %s13, 1
        %s210 = scalar_select %p209, %s13, 1
        %s211 = smul.addr %s210, 3
        %s212 = smul.addr %s211, 8
        %s213 = scalar_lea.vmem %s0, %s212
      $region36: #{double_conv_forward.3} parent=31 // pred_fallthru
        _
    $region32: #{double_conv_forward.3} parent=5 // pred_fallthru
      _
    %p214 = scmp.le.s32.totalorder 1, %s13
    %p215 = scmp.lt.s32.totalorder %s13, 3
    %p216 = pnand %p214, %p215
    %p217 = pneg %p216
    // Predicated region
    $region37: #{double_conv_forward.3} parent=5 // pred_check
      _
    $region38: #{double_conv_forward.3} parent=5 // pred_check_branch
      %219 = sbr.rel (%p216) target = $region40
    $region39: #{double_conv_forward.3} parent=5 // pred_region
      %s220 = ssub.s32 %s13, 1
      %p221 = scmp.lt.s32.totalorder %s18, 1
      %s222 = scalar_select %p221, %s18, 1
      %s223 = smul.addr %s222, 3
      %s224 = smul.addr %s223, 8
      %s225 = scalar_lea.vmem %s0, %s224
      %p226 = pneg %p39
      %p227 = pneg %p36
      %p228 = pneg %p60
      %p229 = pneg %p57
      %p230 = pneg %p81
      %p231 = pneg %p78
      %p232 = pneg %p102
      %p233 = pneg %p99
      %p234 = pneg %p123
      %p235 = pneg %p120
      %p236 = pneg %p149
      %p237 = pneg %p146
      %p238 = scmp.lt.s32.totalorder %s18, 1
      %s239 = scalar_select %p238, %s18, 1
      %s240 = smul.addr %s239, 2
      %s241 = smul.addr %s240, 8
      %s242 = scalar_lea.vmem %s5, %s241
      %p243 = pneg %p175
      %p244 = pneg %p172
      %p245 = scmp.lt.s32.totalorder %s18, 1
      %s246 = scalar_select %p245, %s18, 1
      %s247 = smul.addr %s246, 2
      %s248 = scalar_lea.vmem %s6, %s247
      %p249 = scmp.lt.s32.totalorder %s18, 1
      %s250 = scalar_select %p249, %s18, 1
      %s251 = smul.addr %s250, 3
      %s252 = smul.addr %s251, 8
      %s253 = scalar_lea.vmem %s0, %s252
      %p254 = scmp.lt.s32.totalorder %s18, 1
      %s255 = scalar_select %p254, %s18, 1
      %s256 = smul.addr %s255, 2
      %s257 = smul.addr %s256, 8
      %s258 = scalar_lea.vmem %s5, %s257
      %p259 = scmp.lt.s32.totalorder %s18, 1
      %s260 = scalar_select %p259, %s18, 1
      %s261 = smul.addr %s260, 2
      %s262 = scalar_lea.vmem %s6, %s261
      %v264 = vld [vmem:[%s253] sm:$0xff]
      %v265 = vld [vmem:[%s253 + $0x8] sm:$0xff]
      %v266 = vpack.c.bf16 %v265, %v264
      %v267 = vld [vmem:[%s1] sm:$0xf]
      %v268 = vld [vmem:[%s1 + $0x4] sm:$0xf]
      %v269 = vld [vmem:[%s1 + $0x8] sm:$0xf]
      %v270 = vld [vmem:[%s1 + $0xc] sm:$0xf]
      %v271 = vld [vmem:[%s1 + $0x10] sm:$0xf]
      %v272 = vld [vmem:[%s1 + $0x14] sm:$0xf]
      %v273 = vld [vmem:[%s1 + $0x18] sm:$0xf]
      %v274 = vld [vmem:[%s1 + $0x1c] sm:$0xf]
      %v275 = vld [vmem:[%s1 + $0x20] sm:$0xf]
      %v276 = vld [vmem:[%s1 + $0x24] sm:$0xf]
      %v277 = vld [vmem:[%s1 + $0x28] sm:$0xf]
      %v278 = vld [vmem:[%s1 + $0x2c] sm:$0xf]
      %v279 = vld [vmem:[%s1 + $0x30] sm:$0xf]
      %v280 = vld [vmem:[%s1 + $0x34] sm:$0xf]
      %v281 = vld [vmem:[%s1 + $0x38] sm:$0xf]
      %v282 = vld [vmem:[%s1 + $0x3c] sm:$0xf]
      %v283 = vld [vmem:[%s253 + $0x1] sm:$0xff]
      %v284 = vld [vmem:[%s253 + $0x9] sm:$0xff]
      %v285 = vpack.c.bf16 %v284, %v283
      %s286 = scalar_lea.vmem %s1, 64
      %v287 = vld [vmem:[%s286] sm:$0xf]
      %v288 = vld [vmem:[%s286 + $0x4] sm:$0xf]
      %v289 = vld [vmem:[%s286 + $0x8] sm:$0xf]
      %v290 = vld [vmem:[%s286 + $0xc] sm:$0xf]
      %v291 = vld [vmem:[%s286 + $0x10] sm:$0xf]
      %v292 = vld [vmem:[%s286 + $0x14] sm:$0xf]
      %v293 = vld [vmem:[%s286 + $0x18] sm:$0xf]
      %v294 = vld [vmem:[%s286 + $0x1c] sm:$0xf]
      %v295 = vld [vmem:[%s286 + $0x20] sm:$0xf]
      %v296 = vld [vmem:[%s286 + $0x24] sm:$0xf]
      %v297 = vld [vmem:[%s286 + $0x28] sm:$0xf]
      %v298 = vld [vmem:[%s286 + $0x2c] sm:$0xf]
      %v299 = vld [vmem:[%s286 + $0x30] sm:$0xf]
      %v300 = vld [vmem:[%s286 + $0x34] sm:$0xf]
      %v301 = vld [vmem:[%s286 + $0x38] sm:$0xf]
      %v302 = vld [vmem:[%s286 + $0x3c] sm:$0xf]
      %v319 = vunpack.c.l.b16 %v287
      %v320 = vunpack.c.l.b16 %v288
      %v321 = vunpack.c.l.b16 %v289
      %v322 = vunpack.c.l.b16 %v290
      %v323 = vunpack.c.l.b16 %v291
      %v324 = vunpack.c.l.b16 %v292
      %v325 = vunpack.c.l.b16 %v293
      %v326 = vunpack.c.l.b16 %v294
      %v327 = vunpack.c.l.b16 %v295
      %v328 = vunpack.c.l.b16 %v296
      %v329 = vunpack.c.l.b16 %v297
      %v330 = vunpack.c.l.b16 %v298
      %v331 = vunpack.c.l.b16 %v299
      %v332 = vunpack.c.l.b16 %v300
      %v333 = vunpack.c.l.b16 %v301
      %v334 = vunpack.c.l.b16 %v302
      %v335 = vpack.c.b16 %v320, %v319
      %v336 = vpack.c.b16 %v322, %v321
      %v337 = vpack.c.b16 %v324, %v323
      %v338 = vpack.c.b16 %v326, %v325
      %v339 = vpack.c.b16 %v328, %v327
      %v340 = vpack.c.b16 %v330, %v329
      %v341 = vpack.c.b16 %v332, %v331
      %v342 = vpack.c.b16 %v334, %v333
      %351 = vmatprep.subr.bf16.mxu0 0
      %352 = vmatpush1.bf16.msra.mxu0 %v342
      %353 = vmatprep.subr.bf16.mxu0 0
      %354 = vmatpush1.bf16.msra.mxu0 %v341
      %355 = vmatprep.subr.bf16.mxu0 0
      %356 = vmatpush1.bf16.msra.mxu0 %v340
      %357 = vmatprep.subr.bf16.mxu0 0
      %358 = vmatpush1.bf16.msra.mxu0 %v339
      %359 = vmatprep.subr.bf16.mxu0 0
      %360 = vmatpush1.bf16.msra.mxu0 %v338
      %361 = vmatprep.subr.bf16.mxu0 0
      %362 = vmatpush1.bf16.msra.mxu0 %v337
      %363 = vmatprep.subr.bf16.mxu0 0
      %364 = vmatpush1.bf16.msra.mxu0 %v336
      %365 = vmatprep.subr.bf16.mxu0 0
      %366 = vmatpush1.bf16.msra.mxu0 %v335
      %367 = vmatprep.subr.bf16.mxu0 0
      %368 = vmatpush2.bf16.msra.mxu0 0
      %369 = vmatprep.subr.bf16.mxu0 0
      %370 = vmatpush2.bf16.msra.mxu0 0
      %371 = vmatprep.subr.bf16.mxu0 0
      %372 = vmatpush2.bf16.msra.mxu0 0
      %373 = vmatprep.subr.bf16.mxu0 0
      %374 = vmatpush2.bf16.msra.mxu0 0
      %375 = vmatprep.subr.bf16.mxu0 0
      %376 = vmatpush2.bf16.msra.mxu0 0
      %377 = vmatprep.subr.bf16.mxu0 0
      %378 = vmatpush2.bf16.msra.mxu0 0
      %379 = vmatprep.subr.bf16.mxu0 0
      %380 = vmatpush2.bf16.msra.mxu0 0
      %381 = vmatprep.subr.bf16.mxu0 0
      %382 = vmatpush2.bf16.msra.mxu0 0
      %383 = vmatprep.mubr.bf16.mxu0 0
      %384 = vmatmul.mubr.bf16.gmra.mxu0 %v285
      %v385 = vpop.f32.mrf.mxu0
      %v386 = vadd.f32 0.0, %v385
      %v387 = vpop.f32.mrf.mxu0
      %v388 = vpop.f32.mrf.mxu0
      %v389 = vadd.f32 0.0, %v388
      %v390 = vpop.f32.mrf.mxu0
      %391 = vdwg.mxu0
      %v408 = vunpack.c.l.b16 %v267
      %v409 = vunpack.c.l.b16 %v268
      %v410 = vunpack.c.l.b16 %v269
      %v411 = vunpack.c.l.b16 %v270
      %v412 = vunpack.c.l.b16 %v271
      %v413 = vunpack.c.l.b16 %v272
      %v414 = vunpack.c.l.b16 %v273
      %v415 = vunpack.c.l.b16 %v274
      %v416 = vunpack.c.l.b16 %v275
      %v417 = vunpack.c.l.b16 %v276
      %v418 = vunpack.c.l.b16 %v277
      %v419 = vunpack.c.l.b16 %v278
      %v420 = vunpack.c.l.b16 %v279
      %v421 = vunpack.c.l.b16 %v280
      %v422 = vunpack.c.l.b16 %v281
      %v423 = vunpack.c.l.b16 %v282
      %v424 = vpack.c.b16 %v409, %v408
      %v425 = vpack.c.b16 %v411, %v410
      %v426 = vpack.c.b16 %v413, %v412
      %v427 = vpack.c.b16 %v415, %v414
      %v428 = vpack.c.b16 %v417, %v416
      %v429 = vpack.c.b16 %v419, %v418
      %v430 = vpack.c.b16 %v421, %v420
      %v431 = vpack.c.b16 %v423, %v422
      %440 = vmatprep.subr.bf16.mxu0 0
      %441 = vmatpush1.bf16.msra.mxu0 %v431
      %442 = vmatprep.subr.bf16.mxu0 0
      %443 = vmatpush1.bf16.msra.mxu0 %v430
      %444 = vmatprep.subr.bf16.mxu0 0
      %445 = vmatpush1.bf16.msra.mxu0 %v429
      %446 = vmatprep.subr.bf16.mxu0 0
      %447 = vmatpush1.bf16.msra.mxu0 %v428
      %448 = vmatprep.subr.bf16.mxu0 0
      %449 = vmatpush1.bf16.msra.mxu0 %v427
      %450 = vmatprep.subr.bf16.mxu0 0
      %451 = vmatpush1.bf16.msra.mxu0 %v426
      %452 = vmatprep.subr.bf16.mxu0 0
      %453 = vmatpush1.bf16.msra.mxu0 %v425
      %454 = vmatprep.subr.bf16.mxu0 0
      %455 = vmatpush1.bf16.msra.mxu0 %v424
      %456 = vmatprep.subr.bf16.mxu0 0
      %457 = vmatpush2.bf16.msra.mxu0 0
      %458 = vmatprep.subr.bf16.mxu0 0
      %459 = vmatpush2.bf16.msra.mxu0 0
      %460 = vmatprep.subr.bf16.mxu0 0
      %461 = vmatpush2.bf16.msra.mxu0 0
      %462 = vmatprep.subr.bf16.mxu0 0
      %463 = vmatpush2.bf16.msra.mxu0 0
      %464 = vmatprep.subr.bf16.mxu0 0
      %465 = vmatpush2.bf16.msra.mxu0 0
      %466 = vmatprep.subr.bf16.mxu0 0
      %467 = vmatpush2.bf16.msra.mxu0 0
      %468 = vmatprep.subr.bf16.mxu0 0
      %469 = vmatpush2.bf16.msra.mxu0 0
      %470 = vmatprep.subr.bf16.mxu0 0
      %471 = vmatpush2.bf16.msra.mxu0 0
      %472 = vmatprep.mubr.bf16.mxu0 0
      %473 = vmatmul.mubr.bf16.gmra.mxu0 %v266
      %v474 = vpop.f32.mrf.mxu0
      %v475 = vadd.f32 %v386, %v474
      %v476 = vpop.f32.mrf.mxu0
      %v477 = vpop.f32.mrf.mxu0
      %v478 = vadd.f32 %v389, %v477
      %v479 = vpop.f32.mrf.mxu0
      %480 = vdwg.mxu0
      %v481 = vld [vmem:[%s253 + $0x2] sm:$0xff]
      %v482 = vld [vmem:[%s253 + $0xa] sm:$0xff]
      %v483 = vpack.c.bf16 %v482, %v481
      %s484 = scalar_lea.vmem %s1, 128
      %v485 = vld [vmem:[%s484] sm:$0xf]
      %v486 = vld [vmem:[%s484 + $0x4] sm:$0xf]
      %v487 = vld [vmem:[%s484 + $0x8] sm:$0xf]
      %v488 = vld [vmem:[%s484 + $0xc] sm:$0xf]
      %v489 = vld [vmem:[%s484 + $0x10] sm:$0xf]
      %v490 = vld [vmem:[%s484 + $0x14] sm:$0xf]
      %v491 = vld [vmem:[%s484 + $0x18] sm:$0xf]
      %v492 = vld [vmem:[%s484 + $0x1c] sm:$0xf]
      %v493 = vld [vmem:[%s484 + $0x20] sm:$0xf]
      %v494 = vld [vmem:[%s484 + $0x24] sm:$0xf]
      %v495 = vld [vmem:[%s484 + $0x28] sm:$0xf]
      %v496 = vld [vmem:[%s484 + $0x2c] sm:$0xf]
      %v497 = vld [vmem:[%s484 + $0x30] sm:$0xf]
      %v498 = vld [vmem:[%s484 + $0x34] sm:$0xf]
      %v499 = vld [vmem:[%s484 + $0x38] sm:$0xf]
      %v500 = vld [vmem:[%s484 + $0x3c] sm:$0xf]
      %v517 = vunpack.c.l.b16 %v485
      %v518 = vunpack.c.l.b16 %v486
      %v519 = vunpack.c.l.b16 %v487
      %v520 = vunpack.c.l.b16 %v488
      %v521 = vunpack.c.l.b16 %v489
      %v522 = vunpack.c.l.b16 %v490
      %v523 = vunpack.c.l.b16 %v491
      %v524 = vunpack.c.l.b16 %v492
      %v525 = vunpack.c.l.b16 %v493
      %v526 = vunpack.c.l.b16 %v494
      %v527 = vunpack.c.l.b16 %v495
      %v528 = vunpack.c.l.b16 %v496
      %v529 = vunpack.c.l.b16 %v497
      %v530 = vunpack.c.l.b16 %v498
      %v531 = vunpack.c.l.b16 %v499
      %v532 = vunpack.c.l.b16 %v500
      %v533 = vpack.c.b16 %v518, %v517
      %v534 = vpack.c.b16 %v520, %v519
      %v535 = vpack.c.b16 %v522, %v521
      %v536 = vpack.c.b16 %v524, %v523
      %v537 = vpack.c.b16 %v526, %v525
      %v538 = vpack.c.b16 %v528, %v527
      %v539 = vpack.c.b16 %v530, %v529
      %v540 = vpack.c.b16 %v532, %v531
      %549 = vmatprep.subr.bf16.mxu0 0
      %550 = vmatpush1.bf16.msra.mxu0 %v540
      %551 = vmatprep.subr.bf16.mxu0 0
      %552 = vmatpush1.bf16.msra.mxu0 %v539
      %553 = vmatprep.subr.bf16.mxu0 0
      %554 = vmatpush1.bf16.msra.mxu0 %v538
      %555 = vmatprep.subr.bf16.mxu0 0
      %556 = vmatpush1.bf16.msra.mxu0 %v537
      %557 = vmatprep.subr.bf16.mxu0 0
      %558 = vmatpush1.bf16.msra.mxu0 %v536
      %559 = vmatprep.subr.bf16.mxu0 0
      %560 = vmatpush1.bf16.msra.mxu0 %v535
      %561 = vmatprep.subr.bf16.mxu0 0
      %562 = vmatpush1.bf16.msra.mxu0 %v534
      %563 = vmatprep.subr.bf16.mxu0 0
      %564 = vmatpush1.bf16.msra.mxu0 %v533
      %565 = vmatprep.subr.bf16.mxu0 0
      %566 = vmatpush2.bf16.msra.mxu0 0
      %567 = vmatprep.subr.bf16.mxu0 0
      %568 = vmatpush2.bf16.msra.mxu0 0
      %569 = vmatprep.subr.bf16.mxu0 0
      %570 = vmatpush2.bf16.msra.mxu0 0
      %571 = vmatprep.subr.bf16.mxu0 0
      %572 = vmatpush2.bf16.msra.mxu0 0
      %573 = vmatprep.subr.bf16.mxu0 0
      %574 = vmatpush2.bf16.msra.mxu0 0
      %575 = vmatprep.subr.bf16.mxu0 0
      %576 = vmatpush2.bf16.msra.mxu0 0
      %577 = vmatprep.subr.bf16.mxu0 0
      %578 = vmatpush2.bf16.msra.mxu0 0
      %579 = vmatprep.subr.bf16.mxu0 0
      %580 = vmatpush2.bf16.msra.mxu0 0
      %581 = vmatprep.mubr.bf16.mxu0 0
      %582 = vmatmul.mubr.bf16.gmra.mxu0 %v483
      %v583 = vpop.f32.mrf.mxu0
      %v584 = vadd.f32 0.0, %v583
      %v585 = vpop.f32.mrf.mxu0
      %v586 = vpop.f32.mrf.mxu0
      %v587 = vadd.f32 0.0, %v586
      %v588 = vpop.f32.mrf.mxu0
      %589 = vdwg.mxu0
      %v590 = vadd.f32 %v475, %v584
      %v591 = vadd.f32 %v478, %v587
      %v592 = vld [vmem:[%s2] sm:$0x1]
      %v594 = vlaneseq
      %v595 = vshrl.u32 %v594, 7
      %v596 = vsub.s32 0, %v595
      %v597 = vrot.slane %v592, %v596
      %v599 = vmul.f32 %v590, %v597
      %v600 = vmul.f32 %v591, %v597
      %v601 = vld [vmem:[%s3] sm:$0x1]
      %v603 = vlaneseq
      %v604 = vshrl.u32 %v603, 7
      %v605 = vsub.s32 0, %v604
      %v606 = vrot.slane %v601, %v605
      %v608 = vadd.f32 %v599, %v606
      %v609 = vadd.f32 %v600, %v606
      %v610 = vmax.f32 %v608, 0.0
      %v611 = vmax.f32 %v609, 0.0
      %612 = vst [vmem:[#allocation2] sm:$0xff] 0.0
      %613 = vst [vmem:[#allocation2 + $0x8] sm:$0xff] 0.0
      %614 = vst [vmem:[#allocation2 + $0x10] sm:$0x3] 0.0
      %615 = vst [vmem:[#allocation2 + $0x1] sm:$0xff] %v610
      %616 = vst [vmem:[#allocation2 + $0x9] sm:$0xff] %v611
      %v617 = vld [vmem:[#allocation2] sm:$0xff]
      %v618 = vld [vmem:[#allocation2 + $0x8] sm:$0xff]
      %v619 = vpack.c.bf16 %v618, %v617
      %v620 = vld [vmem:[%s4] sm:$0xf]
      %v621 = vld [vmem:[%s4 + $0x4] sm:$0xf]
      %v622 = vld [vmem:[%s4 + $0x8] sm:$0xf]
      %v623 = vld [vmem:[%s4 + $0xc] sm:$0xf]
      %v624 = vld [vmem:[%s4 + $0x10] sm:$0xf]
      %v625 = vld [vmem:[%s4 + $0x14] sm:$0xf]
      %v626 = vld [vmem:[%s4 + $0x18] sm:$0xf]
      %v627 = vld [vmem:[%s4 + $0x1c] sm:$0xf]
      %v628 = vld [vmem:[%s4 + $0x20] sm:$0xf]
      %v629 = vld [vmem:[%s4 + $0x24] sm:$0xf]
      %v630 = vld [vmem:[%s4 + $0x28] sm:$0xf]
      %v631 = vld [vmem:[%s4 + $0x2c] sm:$0xf]
      %v632 = vld [vmem:[%s4 + $0x30] sm:$0xf]
      %v633 = vld [vmem:[%s4 + $0x34] sm:$0xf]
      %v634 = vld [vmem:[%s4 + $0x38] sm:$0xf]
      %v635 = vld [vmem:[%s4 + $0x3c] sm:$0xf]
      %v636 = vld [vmem:[#allocation2 + $0x1] sm:$0xff]
      %v637 = vld [vmem:[#allocation2 + $0x9] sm:$0xff]
      %v638 = vpack.c.bf16 %v637, %v636
      %s639 = scalar_lea.vmem %s4, 64
      %v640 = vld [vmem:[%s639] sm:$0xf]
      %v641 = vld [vmem:[%s639 + $0x4] sm:$0xf]
      %v642 = vld [vmem:[%s639 + $0x8] sm:$0xf]
      %v643 = vld [vmem:[%s639 + $0xc] sm:$0xf]
      %v644 = vld [vmem:[%s639 + $0x10] sm:$0xf]
      %v645 = vld [vmem:[%s639 + $0x14] sm:$0xf]
      %v646 = vld [vmem:[%s639 + $0x18] sm:$0xf]
      %v647 = vld [vmem:[%s639 + $0x1c] sm:$0xf]
      %v648 = vld [vmem:[%s639 + $0x20] sm:$0xf]
      %v649 = vld [vmem:[%s639 + $0x24] sm:$0xf]
      %v650 = vld [vmem:[%s639 + $0x28] sm:$0xf]
      %v651 = vld [vmem:[%s639 + $0x2c] sm:$0xf]
      %v652 = vld [vmem:[%s639 + $0x30] sm:$0xf]
      %v653 = vld [vmem:[%s639 + $0x34] sm:$0xf]
      %v654 = vld [vmem:[%s639 + $0x38] sm:$0xf]
      %v655 = vld [vmem:[%s639 + $0x3c] sm:$0xf]
      %v672 = vunpack.c.l.b16 %v640
      %v673 = vunpack.c.l.b16 %v641
      %v674 = vunpack.c.l.b16 %v642
      %v675 = vunpack.c.l.b16 %v643
      %v676 = vunpack.c.l.b16 %v644
      %v677 = vunpack.c.l.b16 %v645
      %v678 = vunpack.c.l.b16 %v646
      %v679 = vunpack.c.l.b16 %v647
      %v680 = vunpack.c.l.b16 %v648
      %v681 = vunpack.c.l.b16 %v649
      %v682 = vunpack.c.l.b16 %v650
      %v683 = vunpack.c.l.b16 %v651
      %v684 = vunpack.c.l.b16 %v652
      %v685 = vunpack.c.l.b16 %v653
      %v686 = vunpack.c.l.b16 %v654
      %v687 = vunpack.c.l.b16 %v655
      %v688 = vpack.c.b16 %v673, %v672
      %v689 = vpack.c.b16 %v675, %v674
      %v690 = vpack.c.b16 %v677, %v676
      %v691 = vpack.c.b16 %v679, %v678
      %v692 = vpack.c.b16 %v681, %v680
      %v693 = vpack.c.b16 %v683, %v682
      %v694 = vpack.c.b16 %v685, %v684
      %v695 = vpack.c.b16 %v687, %v686
      %704 = vmatprep.subr.bf16.mxu0 0
      %705 = vmatpush1.bf16.msra.mxu0 %v695
      %706 = vmatprep.subr.bf16.mxu0 0
      %707 = vmatpush1.bf16.msra.mxu0 %v694
      %708 = vmatprep.subr.bf16.mxu0 0
      %709 = vmatpush1.bf16.msra.mxu0 %v693
      %710 = vmatprep.subr.bf16.mxu0 0
      %711 = vmatpush1.bf16.msra.mxu0 %v692
      %712 = vmatprep.subr.bf16.mxu0 0
      %713 = vmatpush1.bf16.msra.mxu0 %v691
      %714 = vmatprep.subr.bf16.mxu0 0
      %715 = vmatpush1.bf16.msra.mxu0 %v690
      %716 = vmatprep.subr.bf16.mxu0 0
      %717 = vmatpush1.bf16.msra.mxu0 %v689
      %718 = vmatprep.subr.bf16.mxu0 0
      %719 = vmatpush1.bf16.msra.mxu0 %v688
      %720 = vmatprep.subr.bf16.mxu0 0
      %721 = vmatpush2.bf16.msra.mxu0 0
      %722 = vmatprep.subr.bf16.mxu0 0
      %723 = vmatpush2.bf16.msra.mxu0 0
      %724 = vmatprep.subr.bf16.mxu0 0
      %725 = vmatpush2.bf16.msra.mxu0 0
      %726 = vmatprep.subr.bf16.mxu0 0
      %727 = vmatpush2.bf16.msra.mxu0 0
      %728 = vmatprep.subr.bf16.mxu0 0
      %729 = vmatpush2.bf16.msra.mxu0 0
      %730 = vmatprep.subr.bf16.mxu0 0
      %731 = vmatpush2.bf16.msra.mxu0 0
      %732 = vmatprep.subr.bf16.mxu0 0
      %733 = vmatpush2.bf16.msra.mxu0 0
      %734 = vmatprep.subr.bf16.mxu0 0
      %735 = vmatpush2.bf16.msra.mxu0 0
      %736 = vmatprep.mubr.bf16.mxu0 0
      %737 = vmatmul.mubr.bf16.gmra.mxu0 %v638
      %v738 = vpop.f32.mrf.mxu0
      %v739 = vadd.f32 0.0, %v738
      %v740 = vpop.f32.mrf.mxu0
      %v741 = vpop.f32.mrf.mxu0
      %v742 = vadd.f32 0.0, %v741
      %v743 = vpop.f32.mrf.mxu0
      %744 = vdwg.mxu0
      %v761 = vunpack.c.l.b16 %v620
      %v762 = vunpack.c.l.b16 %v621
      %v763 = vunpack.c.l.b16 %v622
      %v764 = vunpack.c.l.b16 %v623
      %v765 = vunpack.c.l.b16 %v624
      %v766 = vunpack.c.l.b16 %v625
      %v767 = vunpack.c.l.b16 %v626
      %v768 = vunpack.c.l.b16 %v627
      %v769 = vunpack.c.l.b16 %v628
      %v770 = vunpack.c.l.b16 %v629
      %v771 = vunpack.c.l.b16 %v630
      %v772 = vunpack.c.l.b16 %v631
      %v773 = vunpack.c.l.b16 %v632
      %v774 = vunpack.c.l.b16 %v633
      %v775 = vunpack.c.l.b16 %v634
      %v776 = vunpack.c.l.b16 %v635
      %v777 = vpack.c.b16 %v762, %v761
      %v778 = vpack.c.b16 %v764, %v763
      %v779 = vpack.c.b16 %v766, %v765
      %v780 = vpack.c.b16 %v768, %v767
      %v781 = vpack.c.b16 %v770, %v769
      %v782 = vpack.c.b16 %v772, %v771
      %v783 = vpack.c.b16 %v774, %v773
      %v784 = vpack.c.b16 %v776, %v775
      %793 = vmatprep.subr.bf16.mxu0 0
      %794 = vmatpush1.bf16.msra.mxu0 %v784
      %795 = vmatprep.subr.bf16.mxu0 0
      %796 = vmatpush1.bf16.msra.mxu0 %v783
      %797 = vmatprep.subr.bf16.mxu0 0
      %798 = vmatpush1.bf16.msra.mxu0 %v782
      %799 = vmatprep.subr.bf16.mxu0 0
      %800 = vmatpush1.bf16.msra.mxu0 %v781
      %801 = vmatprep.subr.bf16.mxu0 0
      %802 = vmatpush1.bf16.msra.mxu0 %v780
      %803 = vmatprep.subr.bf16.mxu0 0
      %804 = vmatpush1.bf16.msra.mxu0 %v779
      %805 = vmatprep.subr.bf16.mxu0 0
      %806 = vmatpush1.bf16.msra.mxu0 %v778
      %807 = vmatprep.subr.bf16.mxu0 0
      %808 = vmatpush1.bf16.msra.mxu0 %v777
      %809 = vmatprep.subr.bf16.mxu0 0
      %810 = vmatpush2.bf16.msra.mxu0 0
      %811 = vmatprep.subr.bf16.mxu0 0
      %812 = vmatpush2.bf16.msra.mxu0 0
      %813 = vmatprep.subr.bf16.mxu0 0
      %814 = vmatpush2.bf16.msra.mxu0 0
      %815 = vmatprep.subr.bf16.mxu0 0
      %816 = vmatpush2.bf16.msra.mxu0 0
      %817 = vmatprep.subr.bf16.mxu0 0
      %818 = vmatpush2.bf16.msra.mxu0 0
      %819 = vmatprep.subr.bf16.mxu0 0
      %820 = vmatpush2.bf16.msra.mxu0 0
      %821 = vmatprep.subr.bf16.mxu0 0
      %822 = vmatpush2.bf16.msra.mxu0 0
      %823 = vmatprep.subr.bf16.mxu0 0
      %824 = vmatpush2.bf16.msra.mxu0 0
      %825 = vmatprep.mubr.bf16.mxu0 0
      %826 = vmatmul.mubr.bf16.gmra.mxu0 %v619
      %v827 = vpop.f32.mrf.mxu0
      %v828 = vadd.f32 %v739, %v827
      %v829 = vpop.f32.mrf.mxu0
      %v830 = vpop.f32.mrf.mxu0
      %v831 = vadd.f32 %v742, %v830
      %v832 = vpop.f32.mrf.mxu0
      %833 = vdwg.mxu0
      %v834 = vld [vmem:[#allocation2 + $0x2] sm:$0xff]
      %v835 = vld [vmem:[#allocation2 + $0xa] sm:$0xff]
      %v836 = vpack.c.bf16 %v835, %v834
      %s837 = scalar_lea.vmem %s4, 128
      %v838 = vld [vmem:[%s837] sm:$0xf]
      %v839 = vld [vmem:[%s837 + $0x4] sm:$0xf]
      %v840 = vld [vmem:[%s837 + $0x8] sm:$0xf]
      %v841 = vld [vmem:[%s837 + $0xc] sm:$0xf]
      %v842 = vld [vmem:[%s837 + $0x10] sm:$0xf]
      %v843 = vld [vmem:[%s837 + $0x14] sm:$0xf]
      %v844 = vld [vmem:[%s837 + $0x18] sm:$0xf]
      %v845 = vld [vmem:[%s837 + $0x1c] sm:$0xf]
      %v846 = vld [vmem:[%s837 + $0x20] sm:$0xf]
      %v847 = vld [vmem:[%s837 + $0x24] sm:$0xf]
      %v848 = vld [vmem:[%s837 + $0x28] sm:$0xf]
      %v849 = vld [vmem:[%s837 + $0x2c] sm:$0xf]
      %v850 = vld [vmem:[%s837 + $0x30] sm:$0xf]
      %v851 = vld [vmem:[%s837 + $0x34] sm:$0xf]
      %v852 = vld [vmem:[%s837 + $0x38] sm:$0xf]
      %v853 = vld [vmem:[%s837 + $0x3c] sm:$0xf]
      %v870 = vunpack.c.l.b16 %v838
      %v871 = vunpack.c.l.b16 %v839
      %v872 = vunpack.c.l.b16 %v840
      %v873 = vunpack.c.l.b16 %v841
      %v874 = vunpack.c.l.b16 %v842
      %v875 = vunpack.c.l.b16 %v843
      %v876 = vunpack.c.l.b16 %v844
      %v877 = vunpack.c.l.b16 %v845
      %v878 = vunpack.c.l.b16 %v846
      %v879 = vunpack.c.l.b16 %v847
      %v880 = vunpack.c.l.b16 %v848
      %v881 = vunpack.c.l.b16 %v849
      %v882 = vunpack.c.l.b16 %v850
      %v883 = vunpack.c.l.b16 %v851
      %v884 = vunpack.c.l.b16 %v852
      %v885 = vunpack.c.l.b16 %v853
      %v886 = vpack.c.b16 %v871, %v870
      %v887 = vpack.c.b16 %v873, %v872
      %v888 = vpack.c.b16 %v875, %v874
      %v889 = vpack.c.b16 %v877, %v876
      %v890 = vpack.c.b16 %v879, %v878
      %v891 = vpack.c.b16 %v881, %v880
      %v892 = vpack.c.b16 %v883, %v882
      %v893 = vpack.c.b16 %v885, %v884
      %902 = vmatprep.subr.bf16.mxu0 0
      %903 = vmatpush1.bf16.msra.mxu0 %v893
      %904 = vmatprep.subr.bf16.mxu0 0
      %905 = vmatpush1.bf16.msra.mxu0 %v892
      %906 = vmatprep.subr.bf16.mxu0 0
      %907 = vmatpush1.bf16.msra.mxu0 %v891
      %908 = vmatprep.subr.bf16.mxu0 0
      %909 = vmatpush1.bf16.msra.mxu0 %v890
      %910 = vmatprep.subr.bf16.mxu0 0
      %911 = vmatpush1.bf16.msra.mxu0 %v889
      %912 = vmatprep.subr.bf16.mxu0 0
      %913 = vmatpush1.bf16.msra.mxu0 %v888
      %914 = vmatprep.subr.bf16.mxu0 0
      %915 = vmatpush1.bf16.msra.mxu0 %v887
      %916 = vmatprep.subr.bf16.mxu0 0
      %917 = vmatpush1.bf16.msra.mxu0 %v886
      %918 = vmatprep.subr.bf16.mxu0 0
      %919 = vmatpush2.bf16.msra.mxu0 0
      %920 = vmatprep.subr.bf16.mxu0 0
      %921 = vmatpush2.bf16.msra.mxu0 0
      %922 = vmatprep.subr.bf16.mxu0 0
      %923 = vmatpush2.bf16.msra.mxu0 0
      %924 = vmatprep.subr.bf16.mxu0 0
      %925 = vmatpush2.bf16.msra.mxu0 0
      %926 = vmatprep.subr.bf16.mxu0 0
      %927 = vmatpush2.bf16.msra.mxu0 0
      %928 = vmatprep.subr.bf16.mxu0 0
      %929 = vmatpush2.bf16.msra.mxu0 0
      %930 = vmatprep.subr.bf16.mxu0 0
      %931 = vmatpush2.bf16.msra.mxu0 0
      %932 = vmatprep.subr.bf16.mxu0 0
      %933 = vmatpush2.bf16.msra.mxu0 0
      %934 = vmatprep.mubr.bf16.mxu0 0
      %935 = vmatmul.mubr.bf16.gmra.mxu0 %v836
      %v936 = vpop.f32.mrf.mxu0
      %v937 = vadd.f32 0.0, %v936
      %v938 = vpop.f32.mrf.mxu0
      %v939 = vpop.f32.mrf.mxu0
      %v940 = vadd.f32 0.0, %v939
      %v941 = vpop.f32.mrf.mxu0
      %942 = vdwg.mxu0
      %v943 = vadd.f32 %v828, %v937
      %v944 = vadd.f32 %v831, %v940
      %945 = vst [vmem:[%s258] sm:$0xff] %v943
      %946 = vst [vmem:[%s258 + $0x8] sm:$0xff] %v944
      %v947 = vadd.f32 %v943, %v944
      %v948 = vrot.slane %v947, 4
      %v949 = vadd.f32 %v947, %v948
      %v950 = vrot.slane %v949, 2
      %v951 = vadd.f32 %v949, %v950
      %v952 = vrot.slane %v951, 1
      %v953 = vadd.f32 %v951, %v952
      %v954 = vmul.f32 %v943, %v943
      %v955 = vmul.f32 %v944, %v944
      %v956 = vadd.f32 %v954, %v955
      %v957 = vrot.slane %v956, 4
      %v958 = vadd.f32 %v956, %v957
      %v959 = vrot.slane %v958, 2
      %v960 = vadd.f32 %v958, %v959
      %v961 = vrot.slane %v960, 1
      %v962 = vadd.f32 %v960, %v961
      %vm963 = vcmask 1040384
      %v964 = vsel %vm963, %v953, %v962
      %965 = vst [vmem:[%s262] sm:$0x3] %v964
      %p966 = scmp.lt.s32.totalorder %s18, 1
      %s967 = scalar_select %p966, %s18, 1
      %s968 = smul.addr %s967, 2
      %s969 = smul.addr %s968, 8
      %s970 = scalar_lea.vmem %s5, %s969
      %p971 = scmp.lt.s32.totalorder %s18, 1
      %s972 = scalar_select %p971, %s18, 1
      %s973 = smul.addr %s972, 2
      %s974 = scalar_lea.vmem %s6, %s973
      // Predicated region
      $region41: #{double_conv_forward.3} parent=39 // pred_check
        %p975 = pneg %p146
      $region42: #{double_conv_forward.3} parent=39 // pred_check_branch
        %977 = sbr.rel (%p975) target = $region44
      $region43: #{double_conv_forward.3} parent=39 // pred_region
        _
      $region44: #{double_conv_forward.3} parent=39 // pred_fallthru
        _
      // Predicated region
      $region45: #{double_conv_forward.3} parent=39 // pred_check
        %p978 = pneg %p172
      $region46: #{double_conv_forward.3} parent=39 // pred_check_branch
        %980 = sbr.rel (%p978) target = $region48
      $region47: #{double_conv_forward.3} parent=39 // pred_region
        _
      $region48: #{double_conv_forward.3} parent=39 // pred_fallthru
        _
    $region40: #{double_conv_forward.3} parent=5 // pred_fallthru
      _
    %p981 = scmp.le.s32.totalorder 2, %s13
    // Predicated region
    $region49: #{double_conv_forward.3} parent=5 // pred_check
      %p982 = pneg %p981
    $region50: #{double_conv_forward.3} parent=5 // pred_check_branch
      %984 = sbr.rel (%p982) target = $region52
    $region51: #{double_conv_forward.3} parent=5 // pred_region
      %s985 = ssub.s32 %s13, 2
      // Predicated region
      $region53: #{double_conv_forward.3} parent=51 // pred_check
        %p986 = pneg %p152
      $region54: #{double_conv_forward.3} parent=51 // pred_check_branch
        %988 = sbr.rel (%p986) target = $region56
      $region55: #{double_conv_forward.3} parent=51 // pred_region
        %p989 = scmp.lt.s32.totalorder %s19, 1
        %s990 = scalar_select %p989, %s19, 1
        %s991 = smul.addr %s990, 2
        %s992 = smul.addr %s991, 8
        %s993 = scalar_lea.vmem %s5, %s992
      $region56: #{double_conv_forward.3} parent=51 // pred_fallthru
        _
      // Predicated region
      $region57: #{double_conv_forward.3} parent=51 // pred_check
        %p994 = pneg %p178
      $region58: #{double_conv_forward.3} parent=51 // pred_check_branch
        %996 = sbr.rel (%p994) target = $region60
      $region59: #{double_conv_forward.3} parent=51 // pred_region
        %p997 = scmp.lt.s32.totalorder %s19, 1
        %s998 = scalar_select %p997, %s19, 1
        %s999 = smul.addr %s998, 2
        %s1000 = scalar_lea.vmem %s6, %s999
      $region60: #{double_conv_forward.3} parent=51 // pred_fallthru
        _
    $region52: #{double_conv_forward.3} parent=5 // pred_fallthru
      _
  $region6: #{double_conv_forward.3} parent=0 // loop_footer
    %s17 = sadd.s32 1, %s13
  $region7: #{double_conv_forward.3} parent=0 // loop_footer_branch
    %12 = sbr.rel target = $region3
  $region8: #{double_conv_forward.3} parent=0 // loop_exit
    _

</llo_original>
